<compile_context>
chip_gen: v5e
topology: v5e:2x2
jax: 0.10.0
libtpu: 0.0.40
codegen_flags: <defaults>
</compile_context>

<pallas_src>
import jax
import jax.numpy as jnp
from jax.experimental import pallas as pl
from jax.experimental.pallas import tpu as pltpu


# ---------------------------------------------------------------------------
# Pallas kernel: fused bidirectional LSTM recurrence + dot-product attention + FC
# ---------------------------------------------------------------------------
def _lstm_attention_kernel(
    x_ref,       # (S*B, D)   time-major input, flattened (row = s*B + b)
    wih_ref,     # (D, 8H)    fused fwd+bwd input->gate weights, cols [i_f,i_b,f_f,f_b,o_f,o_b,g_f,g_b]
    whh_ref,     # (2H, 8H)   per-gate block-diagonal recurrent weights (rows = [h_fwd | h_bwd])
    b_ref,       # (1, 8H)    fused bias (b_ih + b_hh), same column order
    mask_ref,    # (1, 8H)    1.0 on fwd-direction columns, 0.0 on bwd-direction columns
    fcw_ref,     # (2H, O)    fc weight acting on the [fwd | bwd] context
    fcb_ref,     # (1, O)
    out_ref,     # (B, O)
    hist_ref,    # scratch (S, B, 2H): per-timestep [h_fwd | h_bwd]
):
    S, B, H2 = hist_ref.shape
    H = H2 // 2

    # ---- hoisted input projection for BOTH directions: one MXU dot + one bias
    #      broadcast (review: fuse fwd|bwd projection).  Kept as a live value --
    #      the old (S,B,4H) scatter scratches and their masked stores are gone
    #      (review: delete xg_f/xg_b and the non-sublane-aligned scatter).
    proj = (jnp.dot(x_ref[...], wih_ref[...], preferred_element_type=jnp.float32)
            + b_ref[...])                                           # (S*B, 8H)

    whh = whh_ref[...]                                              # (2H, 8H)
    mask = mask_ref[...]                                            # (1, 8H), hoisted

    h2 = jnp.zeros((B, H2), jnp.float32)                            # [h_fwd | h_bwd]
    c2 = jnp.zeros((B, H2), jnp.float32)                            # [c_fwd | c_bwd]

    # ---- serial recurrence, fwd+bwd fused: ONE block-diagonal (B,2H)@(2H,8H)
    #      dot per timestep produces both directions' gates (review item).
    #      Static Python loop -> the proj row slices below are compile-time.
    # TODO(synk): keep whh resident in MXU weight registers across the loop via
    #             pltpu.matmul_push_rhs / matmul_acc_lhs / matmul_pop to remove
    #             S-1 redundant weight pushes from the serial critical path.
    for i in range(S):
        tb = S - 1 - i
        p_f = proj[i * B:(i + 1) * B, :]        # row slab at time i   (fwd scan)
        p_b = proj[tb * B:(tb + 1) * B, :]      # row slab at time S-1-i (bwd scan)
        # fwd-direction gate columns take time i, bwd-direction columns take tb
        pre = p_b + mask * (p_f - p_b)                               # (B, 8H)
        gates = pre + jnp.dot(h2, whh, preferred_element_type=jnp.float32)
        sig = jax.nn.sigmoid(gates[:, :6 * H])    # [i_f i_b f_f f_b o_f o_b]
        g2 = jnp.tanh(gates[:, 6 * H:])           # [g_f g_b]
        i2 = sig[:, 0:2 * H]
        f2 = sig[:, 2 * H:4 * H]
        o2 = sig[:, 4 * H:6 * H]
        c2 = f2 * c2 + i2 * g2                    # both directions at once
        h2 = o2 * jnp.tanh(c2)
        hist_ref[i, :, 0:H] = h2[:, 0:H]          # h_fwd(t = i)
        hist_ref[tb, :, H:H2] = h2[:, H:H2]       # h_bwd(t = S-1-i)

    # ---- dot-product attention over time.  Final carry h2 is exactly
    #      concat(final_fwd_hidden, final_bwd_hidden) as in the PyTorch module.
    lstm = hist_ref[...]                                             # (S, B, 2H)
    scores = jnp.sum(lstm * h2[None, :, :], axis=-1, keepdims=True)  # (S, B, 1)
    m = jnp.max(scores, axis=0, keepdims=True)
    e = jnp.exp(scores - m)
    denom = jnp.sum(e, axis=0, keepdims=True)
    soft = e / denom                       # exact normalization (review item)
    ctx = jnp.sum(lstm * soft, axis=0)                               # (B, 2H)

    # ---- final linear layer
    out_ref[...] = (jnp.dot(ctx, fcw_ref[...], preferred_element_type=jnp.float32)
                    + fcb_ref[...])


# ---------------------------------------------------------------------------
# Wrapper: parameter re-layout + pallas_call
# ---------------------------------------------------------------------------
def lstm_attention_forward(x, params):
    """x: (batch, seq, input_dim) float32  -- same convention as the PyTorch module."""
    B, S, D = x.shape
    H = params["whh_f"].shape[1]
    O = params["fc_b"].shape[0]
    G = 8 * H

    # time-major + flattened so the whole input projection is one matmul in-kernel
    x_flat = jnp.transpose(x, (1, 0, 2)).reshape(S * B, D).astype(jnp.float32)

    def gate_cols(w):
        # PyTorch stacks gates on rows as (i, f, g, o); return per-gate (in_dim, H)
        # column blocks so the fused RHS matrices are plain concatenations.
        wi, wf, wg, wo = jnp.split(w.astype(jnp.float32), 4, axis=0)
        return wi.T, wf.T, wg.T, wo.T

    wi_f, wf_f, wg_f, wo_f = gate_cols(params["wih_f"])
    wi_b, wf_b, wg_b, wo_b = gate_cols(params["wih_b"])
    ri_f, rf_f, rg_f, ro_f = gate_cols(params["whh_f"])
    ri_b, rf_b, rg_b, ro_b = gate_cols(params["whh_b"])

    # Fused 8H gate-column order [i_f,i_b,f_f,f_b,o_f,o_b,g_f,g_b]: one sigmoid on
    # the leading 6H slab, one tanh on the trailing 2H, and the cell update runs
    # on both directions at once with a [fwd|bwd] (B, 2H) carry.
    wih_fused = jnp.concatenate(
        [wi_f, wi_b, wf_f, wf_b, wo_f, wo_b, wg_f, wg_b], axis=1)        # (D, 8H)

    # Per-gate block-diagonal recurrent weights: rows [0:H)=h_fwd, [H:2H)=h_bwd,
    # so ONE (B,2H)@(2H,8H) dot per timestep yields both directions' gates.
    Z = jnp.zeros((H, H), jnp.float32)
    bd = lambda a, b: jnp.block([[a, Z], [Z, b]])
    whh_bd = jnp.concatenate(
        [bd(ri_f, ri_b), bd(rf_f, rf_b), bd(ro_f, ro_b), bd(rg_f, rg_b)],
        axis=1)                                                          # (2H, 8H)

    def gate_bias(bi, bh):
        return jnp.split((bi + bh).astype(jnp.float32), 4)   # (i, f, g, o) chunks
    bi_f, bf_f, bg_f, bo_f = gate_bias(params["bih_f"], params["bhh_f"])
    bi_b, bf_b, bg_b, bo_b = gate_bias(params["bih_b"], params["bhh_b"])
    b_fused = jnp.concatenate(
        [bi_f, bi_b, bf_f, bf_b, bo_f, bo_b, bg_f, bg_b]).reshape(1, G)

    # fwd-direction column selector (even H-chunks are fwd, odd are bwd)
    fwd_mask = (((jnp.arange(G) // H) % 2) == 0).astype(jnp.float32).reshape(1, G)

    fcw = jnp.transpose(params["fc_w"]).astype(jnp.float32)              # (2H, O)
    fcb = params["fc_b"].reshape(1, O).astype(jnp.float32)

    vmem = pl.BlockSpec(memory_space=pltpu.MemorySpace.VMEM)
    # TODO(synk): for production shapes, cast the matmul operands to bf16 (keep the
    #             c/h carry and nonlinearities in f32), split work across the v7x
    #             TensorCores (parallel batch grid or core_map, one direction per
    #             core), and re-budget the (S,B,*) scratch against 64 MiB VMEM.
    return pl.pallas_call(
        _lstm_attention_kernel,
        out_shape=jax.ShapeDtypeStruct((B, O), jnp.float32),
        in_specs=[vmem] * 7,
        out_specs=vmem,
        scratch_shapes=[
            pltpu.VMEM((S, B, 2 * H), jnp.float32),   # fused fwd|bwd hidden history
        ],
        compiler_params=pltpu.CompilerParams(
            vmem_limit_bytes=32 * 1024 * 1024),       # explicit; re-derive if shapes grow
    )(x_flat, wih_fused, whh_bd, b_fused, fwd_mask, fcw, fcb)


# ---------------------------------------------------------------------------
# Pure-JAX reference (mirrors the PyTorch forward exactly) for verification
# ---------------------------------------------------------------------------
def reference_forward(x, params):
    B, S, D = x.shape
    H = params["whh_f"].shape[1]

    def cell(x_t, h, c, wih, whh, b):
        gates = x_t @ wih.T + h @ whh.T + b
        i = jax.nn.sigmoid(gates[:, :H])
        f = jax.nn.sigmoid(gates[:, H:2 * H])
        g = jnp.tanh(gates[:, 2 * H:3 * H])
        o = jax.nn.sigmoid(gates[:, 3 * H:])
        c = f * c + i * g
        h = o * jnp.tanh(c)
        return h, c

    xs = jnp.transpose(x, (1, 0, 2))
    b_f = params["bih_f"] + params["bhh_f"]
    b_b = params["bih_b"] + params["bhh_b"]

    h = jnp.zeros((B, H)); c = jnp.zeros((B, H)); fwd = []
    for t in range(S):
        h, c = cell(xs[t], h, c, params["wih_f"], params["whh_f"], b_f)
        fwd.append(h)
    h_f = h
    fwd = jnp.stack(fwd)

    h = jnp.zeros((B, H)); c = jnp.zeros((B, H)); bwd = [None] * S
    for i in range(S):
        t = S - 1 - i
        h, c = cell(xs[t], h, c, params["wih_b"], params["whh_b"], b_b)
        bwd[t] = h
    h_b = h
    bwd = jnp.stack(bwd)

    lstm_out = jnp.transpose(jnp.concatenate([fwd, bwd], axis=-1), (1, 0, 2))  # (B,S,2H)
    hidden = jnp.concatenate([h_f, h_b], axis=1)                               # (B,2H)
    aw = jnp.einsum("bsk,bk->bs", lstm_out, hidden)
    soft = jax.nn.softmax(aw, axis=1)
    ctx = jnp.einsum("bsk,bs->bk", lstm_out, soft)
    return ctx @ params["fc_w"].T + params["fc_b"]


# ---------------------------------------------------------------------------
# Deterministic parameter init (PyTorch-style uniform(-1/sqrt(H), 1/sqrt(H)))
# ---------------------------------------------------------------------------
def init_params(key, input_dim, hidden, dim_out):
    ks = jax.random.split(key, 10)
    s = 1.0 / float(hidden) ** 0.5
    u = lambda k, shape: jax.random.uniform(k, shape, jnp.float32, -s, s)
    return dict(
        wih_f=u(ks[0], (4 * hidden, input_dim)),
        whh_f=u(ks[1], (4 * hidden, hidden)),
        bih_f=u(ks[2], (4 * hidden,)),
        bhh_f=u(ks[3], (4 * hidden,)),
        wih_b=u(ks[4], (4 * hidden, input_dim)),
        whh_b=u(ks[5], (4 * hidden, hidden)),
        bih_b=u(ks[6], (4 * hidden,)),
        bhh_b=u(ks[7], (4 * hidden,)),
        fc_w=u(ks[8], (dim_out, 2 * hidden)),
        fc_b=u(ks[9], (dim_out,)),
    )


if __name__ == "__main__":
    B, S, D, H, O = 2, 8, 32, 32, 2   # small shapes consistent with the module
    key = jax.random.PRNGKey(0)
    kx, kp = jax.random.split(key)
    x = jax.random.normal(kx, (B, S, D), jnp.float32)
    params = init_params(kp, D, H, O)

    out = jax.block_until_ready(lstm_attention_forward(x, params))
    with jax.default_matmul_precision("highest"):
        ref = reference_forward(x, params)
    assert out.shape == (B, O)
    # Softmax normalization is now exact; the remaining tolerance only covers MXU
    # pass-precision differences between in-kernel dots and the pure-JAX reference.
    assert jnp.allclose(out, ref, atol=5e-3, rtol=5e-3), (out, ref)
    print("KERNEL_OK")
</pallas_src>

<mosaic_0001>
module attributes {stable_mosaic.version = 11 : i64} {
  func.func @_lstm_attention_kernel(%arg0: memref<16x32xf32, #tpu.memory_space<vmem>>, %arg1: memref<32x256xf32, #tpu.memory_space<vmem>>, %arg2: memref<64x256xf32, #tpu.memory_space<vmem>>, %arg3: memref<1x256xf32, #tpu.memory_space<vmem>>, %arg4: memref<1x256xf32, #tpu.memory_space<vmem>>, %arg5: memref<64x2xf32, #tpu.memory_space<vmem>>, %arg6: memref<1x2xf32, #tpu.memory_space<vmem>>, %arg7: memref<2x2xf32, #tpu.memory_space<vmem>>, %arg8: memref<8x2x64xf32, #tpu.memory_space<vmem>>) attributes {dimension_semantics = [], scalar_prefetch = 0 : i64, scratch_operands = 1 : i64, tpu.core_type = #tpu.core_type<tc>} {
    %c0 = arith.constant 0 : index
    %c0_0 = arith.constant 0 : index
    %0 = vector.load %arg0[%c0, %c0_0] : memref<16x32xf32, #tpu.memory_space<vmem>>, vector<16x32xf32>
    %c0_1 = arith.constant 0 : index
    %c0_2 = arith.constant 0 : index
    %1 = vector.load %arg1[%c0_1, %c0_2] : memref<32x256xf32, #tpu.memory_space<vmem>>, vector<32x256xf32>
    %cst = arith.constant dense<0.000000e+00> : vector<16x256xf32>
    %2 = tpu.matmul %0, %1, %cst {dimension_numbers = #tpu.dot_dimension_numbers<[1], [0], [0], [1], [0, 0, 1, 1], [], []>} : vector<16x32xf32>, vector<32x256xf32>, vector<16x256xf32> -> vector<16x256xf32>
    %c0_3 = arith.constant 0 : index
    %c0_4 = arith.constant 0 : index
    %3 = vector.load %arg3[%c0_3, %c0_4] : memref<1x256xf32, #tpu.memory_space<vmem>>, vector<1x256xf32>
    %4 = vector.broadcast %3 : vector<1x256xf32> to vector<16x256xf32>
    %5 = arith.addf %2, %4 : vector<16x256xf32>
    %c0_5 = arith.constant 0 : index
    %c0_6 = arith.constant 0 : index
    %6 = vector.load %arg2[%c0_5, %c0_6] : memref<64x256xf32, #tpu.memory_space<vmem>>, vector<64x256xf32>
    %c0_7 = arith.constant 0 : index
    %c0_8 = arith.constant 0 : index
    %7 = vector.load %arg4[%c0_7, %c0_8] : memref<1x256xf32, #tpu.memory_space<vmem>>, vector<1x256xf32>
    %cst_9 = arith.constant 0.000000e+00 : f32
    %8 = vector.broadcast %cst_9 : f32 to vector<2x64xf32>
    %cst_10 = arith.constant 0.000000e+00 : f32
    %9 = vector.broadcast %cst_10 : f32 to vector<2x64xf32>
    %10 = vector.extract_strided_slice %5 {offsets = [0, 0], sizes = [2, 256], strides = [1, 1]} : vector<16x256xf32> to vector<2x256xf32>
    %11 = vector.extract_strided_slice %5 {offsets = [14, 0], sizes = [2, 256], strides = [1, 1]} : vector<16x256xf32> to vector<2x256xf32>
    %12 = arith.subf %10, %11 : vector<2x256xf32>
    %13 = vector.broadcast %7 : vector<1x256xf32> to vector<2x256xf32>
    %14 = arith.mulf %13, %12 : vector<2x256xf32>
    %15 = arith.addf %11, %14 : vector<2x256xf32>
    %cst_11 = arith.constant dense<0.000000e+00> : vector<2x256xf32>
    %16 = tpu.matmul %8, %6, %cst_11 {dimension_numbers = #tpu.dot_dimension_numbers<[1], [0], [0], [1], [0, 0, 1, 1], [], []>} : vector<2x64xf32>, vector<64x256xf32>, vector<2x256xf32> -> vector<2x256xf32>
    %17 = arith.addf %15, %16 : vector<2x256xf32>
    %18 = vector.extract_strided_slice %17 {offsets = [0, 0], sizes = [2, 192], strides = [1, 1]} : vector<2x256xf32> to vector<2x192xf32>
    %19 = arith.negf %18 : vector<2x192xf32>
    %20 = math.exp %19 : vector<2x192xf32>
    %cst_12 = arith.constant 1.000000e+00 : f32
    %21 = vector.broadcast %cst_12 : f32 to vector<2x192xf32>
    %22 = arith.addf %21, %20 : vector<2x192xf32>
    %23 = arith.divf %21, %22 : vector<2x192xf32>
    %24 = vector.extract_strided_slice %17 {offsets = [0, 192], sizes = [2, 64], strides = [1, 1]} : vector<2x256xf32> to vector<2x64xf32>
    %25 = math.tanh %24 : vector<2x64xf32>
    %26 = vector.extract_strided_slice %23 {offsets = [0, 0], sizes = [2, 64], strides = [1, 1]} : vector<2x192xf32> to vector<2x64xf32>
    %27 = vector.extract_strided_slice %23 {offsets = [0, 64], sizes = [2, 64], strides = [1, 1]} : vector<2x192xf32> to vector<2x64xf32>
    %28 = vector.extract_strided_slice %23 {offsets = [0, 128], sizes = [2, 64], strides = [1, 1]} : vector<2x192xf32> to vector<2x64xf32>
    %29 = arith.mulf %27, %9 : vector<2x64xf32>
    %30 = arith.mulf %26, %25 : vector<2x64xf32>
    %31 = arith.addf %29, %30 : vector<2x64xf32>
    %32 = math.tanh %31 : vector<2x64xf32>
    %33 = arith.mulf %28, %32 : vector<2x64xf32>
    %34 = vector.extract_strided_slice %33 {offsets = [0, 0], sizes = [2, 32], strides = [1, 1]} : vector<2x64xf32> to vector<2x32xf32>
    %c0_13 = arith.constant 0 : index
    %c0_14 = arith.constant 0 : index
    %c0_15 = arith.constant 0 : index
    %35 = vector.load %arg8[%c0_13, %c0_14, %c0_15] : memref<8x2x64xf32, #tpu.memory_space<vmem>>, vector<1x2x32xf32>
    %36 = vector.shape_cast %35 : vector<1x2x32xf32> to vector<2x32xf32>
    %37 = vector.shape_cast %34 : vector<2x32xf32> to vector<1x2x32xf32>
    tpu.vector_store %arg8[%c0_13, %c0_14, %c0_15], %37 {strides = array<i32>} : memref<8x2x64xf32, #tpu.memory_space<vmem>>, vector<1x2x32xf32>,
    %38 = vector.extract_strided_slice %33 {offsets = [0, 32], sizes = [2, 32], strides = [1, 1]} : vector<2x64xf32> to vector<2x32xf32>
    %c7 = arith.constant 7 : index
    %c0_16 = arith.constant 0 : index
    %c32 = arith.constant 32 : index
    %39 = vector.load %arg8[%c7, %c0_16, %c32] : memref<8x2x64xf32, #tpu.memory_space<vmem>>, vector<1x2x32xf32>
    %40 = vector.shape_cast %39 : vector<1x2x32xf32> to vector<2x32xf32>
    %41 = vector.shape_cast %38 : vector<2x32xf32> to vector<1x2x32xf32>
    tpu.vector_store %arg8[%c7, %c0_16, %c32], %41 {strides = array<i32>} : memref<8x2x64xf32, #tpu.memory_space<vmem>>, vector<1x2x32xf32>,
    %42 = vector.extract_strided_slice %5 {offsets = [2, 0], sizes = [2, 256], strides = [1, 1]} : vector<16x256xf32> to vector<2x256xf32>
    %43 = vector.extract_strided_slice %5 {offsets = [12, 0], sizes = [2, 256], strides = [1, 1]} : vector<16x256xf32> to vector<2x256xf32>
    %44 = arith.subf %42, %43 : vector<2x256xf32>
    %45 = vector.broadcast %7 : vector<1x256xf32> to vector<2x256xf32>
    %46 = arith.mulf %45, %44 : vector<2x256xf32>
    %47 = arith.addf %43, %46 : vector<2x256xf32>
    %cst_17 = arith.constant dense<0.000000e+00> : vector<2x256xf32>
    %48 = tpu.matmul %33, %6, %cst_17 {dimension_numbers = #tpu.dot_dimension_numbers<[1], [0], [0], [1], [0, 0, 1, 1], [], []>} : vector<2x64xf32>, vector<64x256xf32>, vector<2x256xf32> -> vector<2x256xf32>
    %49 = arith.addf %47, %48 : vector<2x256xf32>
    %50 = vector.extract_strided_slice %49 {offsets = [0, 0], sizes = [2, 192], strides = [1, 1]} : vector<2x256xf32> to vector<2x192xf32>
    %51 = arith.negf %50 : vector<2x192xf32>
    %52 = math.exp %51 : vector<2x192xf32>
    %cst_18 = arith.constant 1.000000e+00 : f32
    %53 = vector.broadcast %cst_18 : f32 to vector<2x192xf32>
    %54 = arith.addf %53, %52 : vector<2x192xf32>
    %55 = arith.divf %53, %54 : vector<2x192xf32>
    %56 = vector.extract_strided_slice %49 {offsets = [0, 192], sizes = [2, 64], strides = [1, 1]} : vector<2x256xf32> to vector<2x64xf32>
    %57 = math.tanh %56 : vector<2x64xf32>
    %58 = vector.extract_strided_slice %55 {offsets = [0, 0], sizes = [2, 64], strides = [1, 1]} : vector<2x192xf32> to vector<2x64xf32>
    %59 = vector.extract_strided_slice %55 {offsets = [0, 64], sizes = [2, 64], strides = [1, 1]} : vector<2x192xf32> to vector<2x64xf32>
    %60 = vector.extract_strided_slice %55 {offsets = [0, 128], sizes = [2, 64], strides = [1, 1]} : vector<2x192xf32> to vector<2x64xf32>
    %61 = arith.mulf %59, %31 : vector<2x64xf32>
    %62 = arith.mulf %58, %57 : vector<2x64xf32>
    %63 = arith.addf %61, %62 : vector<2x64xf32>
    %64 = math.tanh %63 : vector<2x64xf32>
    %65 = arith.mulf %60, %64 : vector<2x64xf32>
    %66 = vector.extract_strided_slice %65 {offsets = [0, 0], sizes = [2, 32], strides = [1, 1]} : vector<2x64xf32> to vector<2x32xf32>
    %c1 = arith.constant 1 : index
    %c0_19 = arith.constant 0 : index
    %c0_20 = arith.constant 0 : index
    %67 = vector.load %arg8[%c1, %c0_19, %c0_20] : memref<8x2x64xf32, #tpu.memory_space<vmem>>, vector<1x2x32xf32>
    %68 = vector.shape_cast %67 : vector<1x2x32xf32> to vector<2x32xf32>
    %69 = vector.shape_cast %66 : vector<2x32xf32> to vector<1x2x32xf32>
    tpu.vector_store %arg8[%c1, %c0_19, %c0_20], %69 {strides = array<i32>} : memref<8x2x64xf32, #tpu.memory_space<vmem>>, vector<1x2x32xf32>,
    %70 = vector.extract_strided_slice %65 {offsets = [0, 32], sizes = [2, 32], strides = [1, 1]} : vector<2x64xf32> to vector<2x32xf32>
    %c6 = arith.constant 6 : index
    %c0_21 = arith.constant 0 : index
    %c32_22 = arith.constant 32 : index
    %71 = vector.load %arg8[%c6, %c0_21, %c32_22] : memref<8x2x64xf32, #tpu.memory_space<vmem>>, vector<1x2x32xf32>
    %72 = vector.shape_cast %71 : vector<1x2x32xf32> to vector<2x32xf32>
    %73 = vector.shape_cast %70 : vector<2x32xf32> to vector<1x2x32xf32>
    tpu.vector_store %arg8[%c6, %c0_21, %c32_22], %73 {strides = array<i32>} : memref<8x2x64xf32, #tpu.memory_space<vmem>>, vector<1x2x32xf32>,
    %74 = vector.extract_strided_slice %5 {offsets = [4, 0], sizes = [2, 256], strides = [1, 1]} : vector<16x256xf32> to vector<2x256xf32>
    %75 = vector.extract_strided_slice %5 {offsets = [10, 0], sizes = [2, 256], strides = [1, 1]} : vector<16x256xf32> to vector<2x256xf32>
    %76 = arith.subf %74, %75 : vector<2x256xf32>
    %77 = vector.broadcast %7 : vector<1x256xf32> to vector<2x256xf32>
    %78 = arith.mulf %77, %76 : vector<2x256xf32>
    %79 = arith.addf %75, %78 : vector<2x256xf32>
    %cst_23 = arith.constant dense<0.000000e+00> : vector<2x256xf32>
    %80 = tpu.matmul %65, %6, %cst_23 {dimension_numbers = #tpu.dot_dimension_numbers<[1], [0], [0], [1], [0, 0, 1, 1], [], []>} : vector<2x64xf32>, vector<64x256xf32>, vector<2x256xf32> -> vector<2x256xf32>
    %81 = arith.addf %79, %80 : vector<2x256xf32>
    %82 = vector.extract_strided_slice %81 {offsets = [0, 0], sizes = [2, 192], strides = [1, 1]} : vector<2x256xf32> to vector<2x192xf32>
    %83 = arith.negf %82 : vector<2x192xf32>
    %84 = math.exp %83 : vector<2x192xf32>
    %cst_24 = arith.constant 1.000000e+00 : f32
    %85 = vector.broadcast %cst_24 : f32 to vector<2x192xf32>
    %86 = arith.addf %85, %84 : vector<2x192xf32>
    %87 = arith.divf %85, %86 : vector<2x192xf32>
    %88 = vector.extract_strided_slice %81 {offsets = [0, 192], sizes = [2, 64], strides = [1, 1]} : vector<2x256xf32> to vector<2x64xf32>
    %89 = math.tanh %88 : vector<2x64xf32>
    %90 = vector.extract_strided_slice %87 {offsets = [0, 0], sizes = [2, 64], strides = [1, 1]} : vector<2x192xf32> to vector<2x64xf32>
    %91 = vector.extract_strided_slice %87 {offsets = [0, 64], sizes = [2, 64], strides = [1, 1]} : vector<2x192xf32> to vector<2x64xf32>
    %92 = vector.extract_strided_slice %87 {offsets = [0, 128], sizes = [2, 64], strides = [1, 1]} : vector<2x192xf32> to vector<2x64xf32>
    %93 = arith.mulf %91, %63 : vector<2x64xf32>
    %94 = arith.mulf %90, %89 : vector<2x64xf32>
    %95 = arith.addf %93, %94 : vector<2x64xf32>
    %96 = math.tanh %95 : vector<2x64xf32>
    %97 = arith.mulf %92, %96 : vector<2x64xf32>
    %98 = vector.extract_strided_slice %97 {offsets = [0, 0], sizes = [2, 32], strides = [1, 1]} : vector<2x64xf32> to vector<2x32xf32>
    %c2 = arith.constant 2 : index
    %c0_25 = arith.constant 0 : index
    %c0_26 = arith.constant 0 : index
    %99 = vector.load %arg8[%c2, %c0_25, %c0_26] : memref<8x2x64xf32, #tpu.memory_space<vmem>>, vector<1x2x32xf32>
    %100 = vector.shape_cast %99 : vector<1x2x32xf32> to vector<2x32xf32>
    %101 = vector.shape_cast %98 : vector<2x32xf32> to vector<1x2x32xf32>
    tpu.vector_store %arg8[%c2, %c0_25, %c0_26], %101 {strides = array<i32>} : memref<8x2x64xf32, #tpu.memory_space<vmem>>, vector<1x2x32xf32>,
    %102 = vector.extract_strided_slice %97 {offsets = [0, 32], sizes = [2, 32], strides = [1, 1]} : vector<2x64xf32> to vector<2x32xf32>
    %c5 = arith.constant 5 : index
    %c0_27 = arith.constant 0 : index
    %c32_28 = arith.constant 32 : index
    %103 = vector.load %arg8[%c5, %c0_27, %c32_28] : memref<8x2x64xf32, #tpu.memory_space<vmem>>, vector<1x2x32xf32>
    %104 = vector.shape_cast %103 : vector<1x2x32xf32> to vector<2x32xf32>
    %105 = vector.shape_cast %102 : vector<2x32xf32> to vector<1x2x32xf32>
    tpu.vector_store %arg8[%c5, %c0_27, %c32_28], %105 {strides = array<i32>} : memref<8x2x64xf32, #tpu.memory_space<vmem>>, vector<1x2x32xf32>,
    %106 = vector.extract_strided_slice %5 {offsets = [6, 0], sizes = [2, 256], strides = [1, 1]} : vector<16x256xf32> to vector<2x256xf32>
    %107 = vector.extract_strided_slice %5 {offsets = [8, 0], sizes = [2, 256], strides = [1, 1]} : vector<16x256xf32> to vector<2x256xf32>
    %108 = arith.subf %106, %107 : vector<2x256xf32>
    %109 = vector.broadcast %7 : vector<1x256xf32> to vector<2x256xf32>
    %110 = arith.mulf %109, %108 : vector<2x256xf32>
    %111 = arith.addf %107, %110 : vector<2x256xf32>
    %cst_29 = arith.constant dense<0.000000e+00> : vector<2x256xf32>
    %112 = tpu.matmul %97, %6, %cst_29 {dimension_numbers = #tpu.dot_dimension_numbers<[1], [0], [0], [1], [0, 0, 1, 1], [], []>} : vector<2x64xf32>, vector<64x256xf32>, vector<2x256xf32> -> vector<2x256xf32>
    %113 = arith.addf %111, %112 : vector<2x256xf32>
    %114 = vector.extract_strided_slice %113 {offsets = [0, 0], sizes = [2, 192], strides = [1, 1]} : vector<2x256xf32> to vector<2x192xf32>
    %115 = arith.negf %114 : vector<2x192xf32>
    %116 = math.exp %115 : vector<2x192xf32>
    %cst_30 = arith.constant 1.000000e+00 : f32
    %117 = vector.broadcast %cst_30 : f32 to vector<2x192xf32>
    %118 = arith.addf %117, %116 : vector<2x192xf32>
    %119 = arith.divf %117, %118 : vector<2x192xf32>
    %120 = vector.extract_strided_slice %113 {offsets = [0, 192], sizes = [2, 64], strides = [1, 1]} : vector<2x256xf32> to vector<2x64xf32>
    %121 = math.tanh %120 : vector<2x64xf32>
    %122 = vector.extract_strided_slice %119 {offsets = [0, 0], sizes = [2, 64], strides = [1, 1]} : vector<2x192xf32> to vector<2x64xf32>
    %123 = vector.extract_strided_slice %119 {offsets = [0, 64], sizes = [2, 64], strides = [1, 1]} : vector<2x192xf32> to vector<2x64xf32>
    %124 = vector.extract_strided_slice %119 {offsets = [0, 128], sizes = [2, 64], strides = [1, 1]} : vector<2x192xf32> to vector<2x64xf32>
    %125 = arith.mulf %123, %95 : vector<2x64xf32>
    %126 = arith.mulf %122, %121 : vector<2x64xf32>
    %127 = arith.addf %125, %126 : vector<2x64xf32>
    %128 = math.tanh %127 : vector<2x64xf32>
    %129 = arith.mulf %124, %128 : vector<2x64xf32>
    %130 = vector.extract_strided_slice %129 {offsets = [0, 0], sizes = [2, 32], strides = [1, 1]} : vector<2x64xf32> to vector<2x32xf32>
    %c3 = arith.constant 3 : index
    %c0_31 = arith.constant 0 : index
    %c0_32 = arith.constant 0 : index
    %131 = vector.load %arg8[%c3, %c0_31, %c0_32] : memref<8x2x64xf32, #tpu.memory_space<vmem>>, vector<1x2x32xf32>
    %132 = vector.shape_cast %131 : vector<1x2x32xf32> to vector<2x32xf32>
    %133 = vector.shape_cast %130 : vector<2x32xf32> to vector<1x2x32xf32>
    tpu.vector_store %arg8[%c3, %c0_31, %c0_32], %133 {strides = array<i32>} : memref<8x2x64xf32, #tpu.memory_space<vmem>>, vector<1x2x32xf32>,
    %134 = vector.extract_strided_slice %129 {offsets = [0, 32], sizes = [2, 32], strides = [1, 1]} : vector<2x64xf32> to vector<2x32xf32>
    %c4 = arith.constant 4 : index
    %c0_33 = arith.constant 0 : index
    %c32_34 = arith.constant 32 : index
    %135 = vector.load %arg8[%c4, %c0_33, %c32_34] : memref<8x2x64xf32, #tpu.memory_space<vmem>>, vector<1x2x32xf32>
    %136 = vector.shape_cast %135 : vector<1x2x32xf32> to vector<2x32xf32>
    %137 = vector.shape_cast %134 : vector<2x32xf32> to vector<1x2x32xf32>
    tpu.vector_store %arg8[%c4, %c0_33, %c32_34], %137 {strides = array<i32>} : memref<8x2x64xf32, #tpu.memory_space<vmem>>, vector<1x2x32xf32>,
    %138 = vector.extract_strided_slice %5 {offsets = [8, 0], sizes = [2, 256], strides = [1, 1]} : vector<16x256xf32> to vector<2x256xf32>
    %139 = vector.extract_strided_slice %5 {offsets = [6, 0], sizes = [2, 256], strides = [1, 1]} : vector<16x256xf32> to vector<2x256xf32>
    %140 = arith.subf %138, %139 : vector<2x256xf32>
    %141 = vector.broadcast %7 : vector<1x256xf32> to vector<2x256xf32>
    %142 = arith.mulf %141, %140 : vector<2x256xf32>
    %143 = arith.addf %139, %142 : vector<2x256xf32>
    %cst_35 = arith.constant dense<0.000000e+00> : vector<2x256xf32>
    %144 = tpu.matmul %129, %6, %cst_35 {dimension_numbers = #tpu.dot_dimension_numbers<[1], [0], [0], [1], [0, 0, 1, 1], [], []>} : vector<2x64xf32>, vector<64x256xf32>, vector<2x256xf32> -> vector<2x256xf32>
    %145 = arith.addf %143, %144 : vector<2x256xf32>
    %146 = vector.extract_strided_slice %145 {offsets = [0, 0], sizes = [2, 192], strides = [1, 1]} : vector<2x256xf32> to vector<2x192xf32>
    %147 = arith.negf %146 : vector<2x192xf32>
    %148 = math.exp %147 : vector<2x192xf32>
    %cst_36 = arith.constant 1.000000e+00 : f32
    %149 = vector.broadcast %cst_36 : f32 to vector<2x192xf32>
    %150 = arith.addf %149, %148 : vector<2x192xf32>
    %151 = arith.divf %149, %150 : vector<2x192xf32>
    %152 = vector.extract_strided_slice %145 {offsets = [0, 192], sizes = [2, 64], strides = [1, 1]} : vector<2x256xf32> to vector<2x64xf32>
    %153 = math.tanh %152 : vector<2x64xf32>
    %154 = vector.extract_strided_slice %151 {offsets = [0, 0], sizes = [2, 64], strides = [1, 1]} : vector<2x192xf32> to vector<2x64xf32>
    %155 = vector.extract_strided_slice %151 {offsets = [0, 64], sizes = [2, 64], strides = [1, 1]} : vector<2x192xf32> to vector<2x64xf32>
    %156 = vector.extract_strided_slice %151 {offsets = [0, 128], sizes = [2, 64], strides = [1, 1]} : vector<2x192xf32> to vector<2x64xf32>
    %157 = arith.mulf %155, %127 : vector<2x64xf32>
    %158 = arith.mulf %154, %153 : vector<2x64xf32>
    %159 = arith.addf %157, %158 : vector<2x64xf32>
    %160 = math.tanh %159 : vector<2x64xf32>
    %161 = arith.mulf %156, %160 : vector<2x64xf32>
    %162 = vector.extract_strided_slice %161 {offsets = [0, 0], sizes = [2, 32], strides = [1, 1]} : vector<2x64xf32> to vector<2x32xf32>
    %c4_37 = arith.constant 4 : index
    %c0_38 = arith.constant 0 : index
    %c0_39 = arith.constant 0 : index
    %163 = vector.load %arg8[%c4_37, %c0_38, %c0_39] : memref<8x2x64xf32, #tpu.memory_space<vmem>>, vector<1x2x32xf32>
    %164 = vector.shape_cast %163 : vector<1x2x32xf32> to vector<2x32xf32>
    %165 = vector.shape_cast %162 : vector<2x32xf32> to vector<1x2x32xf32>
    tpu.vector_store %arg8[%c4_37, %c0_38, %c0_39], %165 {strides = array<i32>} : memref<8x2x64xf32, #tpu.memory_space<vmem>>, vector<1x2x32xf32>,
    %166 = vector.extract_strided_slice %161 {offsets = [0, 32], sizes = [2, 32], strides = [1, 1]} : vector<2x64xf32> to vector<2x32xf32>
    %c3_40 = arith.constant 3 : index
    %c0_41 = arith.constant 0 : index
    %c32_42 = arith.constant 32 : index
    %167 = vector.load %arg8[%c3_40, %c0_41, %c32_42] : memref<8x2x64xf32, #tpu.memory_space<vmem>>, vector<1x2x32xf32>
    %168 = vector.shape_cast %167 : vector<1x2x32xf32> to vector<2x32xf32>
    %169 = vector.shape_cast %166 : vector<2x32xf32> to vector<1x2x32xf32>
    tpu.vector_store %arg8[%c3_40, %c0_41, %c32_42], %169 {strides = array<i32>} : memref<8x2x64xf32, #tpu.memory_space<vmem>>, vector<1x2x32xf32>,
    %170 = vector.extract_strided_slice %5 {offsets = [10, 0], sizes = [2, 256], strides = [1, 1]} : vector<16x256xf32> to vector<2x256xf32>
    %171 = vector.extract_strided_slice %5 {offsets = [4, 0], sizes = [2, 256], strides = [1, 1]} : vector<16x256xf32> to vector<2x256xf32>
    %172 = arith.subf %170, %171 : vector<2x256xf32>
    %173 = vector.broadcast %7 : vector<1x256xf32> to vector<2x256xf32>
    %174 = arith.mulf %173, %172 : vector<2x256xf32>
    %175 = arith.addf %171, %174 : vector<2x256xf32>
    %cst_43 = arith.constant dense<0.000000e+00> : vector<2x256xf32>
    %176 = tpu.matmul %161, %6, %cst_43 {dimension_numbers = #tpu.dot_dimension_numbers<[1], [0], [0], [1], [0, 0, 1, 1], [], []>} : vector<2x64xf32>, vector<64x256xf32>, vector<2x256xf32> -> vector<2x256xf32>
    %177 = arith.addf %175, %176 : vector<2x256xf32>
    %178 = vector.extract_strided_slice %177 {offsets = [0, 0], sizes = [2, 192], strides = [1, 1]} : vector<2x256xf32> to vector<2x192xf32>
    %179 = arith.negf %178 : vector<2x192xf32>
    %180 = math.exp %179 : vector<2x192xf32>
    %cst_44 = arith.constant 1.000000e+00 : f32
    %181 = vector.broadcast %cst_44 : f32 to vector<2x192xf32>
    %182 = arith.addf %181, %180 : vector<2x192xf32>
    %183 = arith.divf %181, %182 : vector<2x192xf32>
    %184 = vector.extract_strided_slice %177 {offsets = [0, 192], sizes = [2, 64], strides = [1, 1]} : vector<2x256xf32> to vector<2x64xf32>
    %185 = math.tanh %184 : vector<2x64xf32>
    %186 = vector.extract_strided_slice %183 {offsets = [0, 0], sizes = [2, 64], strides = [1, 1]} : vector<2x192xf32> to vector<2x64xf32>
    %187 = vector.extract_strided_slice %183 {offsets = [0, 64], sizes = [2, 64], strides = [1, 1]} : vector<2x192xf32> to vector<2x64xf32>
    %188 = vector.extract_strided_slice %183 {offsets = [0, 128], sizes = [2, 64], strides = [1, 1]} : vector<2x192xf32> to vector<2x64xf32>
    %189 = arith.mulf %187, %159 : vector<2x64xf32>
    %190 = arith.mulf %186, %185 : vector<2x64xf32>
    %191 = arith.addf %189, %190 : vector<2x64xf32>
    %192 = math.tanh %191 : vector<2x64xf32>
    %193 = arith.mulf %188, %192 : vector<2x64xf32>
    %194 = vector.extract_strided_slice %193 {offsets = [0, 0], sizes = [2, 32], strides = [1, 1]} : vector<2x64xf32> to vector<2x32xf32>
    %c5_45 = arith.constant 5 : index
    %c0_46 = arith.constant 0 : index
    %c0_47 = arith.constant 0 : index
    %195 = vector.load %arg8[%c5_45, %c0_46, %c0_47] : memref<8x2x64xf32, #tpu.memory_space<vmem>>, vector<1x2x32xf32>
    %196 = vector.shape_cast %195 : vector<1x2x32xf32> to vector<2x32xf32>
    %197 = vector.shape_cast %194 : vector<2x32xf32> to vector<1x2x32xf32>
    tpu.vector_store %arg8[%c5_45, %c0_46, %c0_47], %197 {strides = array<i32>} : memref<8x2x64xf32, #tpu.memory_space<vmem>>, vector<1x2x32xf32>,
    %198 = vector.extract_strided_slice %193 {offsets = [0, 32], sizes = [2, 32], strides = [1, 1]} : vector<2x64xf32> to vector<2x32xf32>
    %c2_48 = arith.constant 2 : index
    %c0_49 = arith.constant 0 : index
    %c32_50 = arith.constant 32 : index
    %199 = vector.load %arg8[%c2_48, %c0_49, %c32_50] : memref<8x2x64xf32, #tpu.memory_space<vmem>>, vector<1x2x32xf32>
    %200 = vector.shape_cast %199 : vector<1x2x32xf32> to vector<2x32xf32>
    %201 = vector.shape_cast %198 : vector<2x32xf32> to vector<1x2x32xf32>
    tpu.vector_store %arg8[%c2_48, %c0_49, %c32_50], %201 {strides = array<i32>} : memref<8x2x64xf32, #tpu.memory_space<vmem>>, vector<1x2x32xf32>,
    %202 = vector.extract_strided_slice %5 {offsets = [12, 0], sizes = [2, 256], strides = [1, 1]} : vector<16x256xf32> to vector<2x256xf32>
    %203 = vector.extract_strided_slice %5 {offsets = [2, 0], sizes = [2, 256], strides = [1, 1]} : vector<16x256xf32> to vector<2x256xf32>
    %204 = arith.subf %202, %203 : vector<2x256xf32>
    %205 = vector.broadcast %7 : vector<1x256xf32> to vector<2x256xf32>
    %206 = arith.mulf %205, %204 : vector<2x256xf32>
    %207 = arith.addf %203, %206 : vector<2x256xf32>
    %cst_51 = arith.constant dense<0.000000e+00> : vector<2x256xf32>
    %208 = tpu.matmul %193, %6, %cst_51 {dimension_numbers = #tpu.dot_dimension_numbers<[1], [0], [0], [1], [0, 0, 1, 1], [], []>} : vector<2x64xf32>, vector<64x256xf32>, vector<2x256xf32> -> vector<2x256xf32>
    %209 = arith.addf %207, %208 : vector<2x256xf32>
    %210 = vector.extract_strided_slice %209 {offsets = [0, 0], sizes = [2, 192], strides = [1, 1]} : vector<2x256xf32> to vector<2x192xf32>
    %211 = arith.negf %210 : vector<2x192xf32>
    %212 = math.exp %211 : vector<2x192xf32>
    %cst_52 = arith.constant 1.000000e+00 : f32
    %213 = vector.broadcast %cst_52 : f32 to vector<2x192xf32>
    %214 = arith.addf %213, %212 : vector<2x192xf32>
    %215 = arith.divf %213, %214 : vector<2x192xf32>
    %216 = vector.extract_strided_slice %209 {offsets = [0, 192], sizes = [2, 64], strides = [1, 1]} : vector<2x256xf32> to vector<2x64xf32>
    %217 = math.tanh %216 : vector<2x64xf32>
    %218 = vector.extract_strided_slice %215 {offsets = [0, 0], sizes = [2, 64], strides = [1, 1]} : vector<2x192xf32> to vector<2x64xf32>
    %219 = vector.extract_strided_slice %215 {offsets = [0, 64], sizes = [2, 64], strides = [1, 1]} : vector<2x192xf32> to vector<2x64xf32>
    %220 = vector.extract_strided_slice %215 {offsets = [0, 128], sizes = [2, 64], strides = [1, 1]} : vector<2x192xf32> to vector<2x64xf32>
    %221 = arith.mulf %219, %191 : vector<2x64xf32>
    %222 = arith.mulf %218, %217 : vector<2x64xf32>
    %223 = arith.addf %221, %222 : vector<2x64xf32>
    %224 = math.tanh %223 : vector<2x64xf32>
    %225 = arith.mulf %220, %224 : vector<2x64xf32>
    %226 = vector.extract_strided_slice %225 {offsets = [0, 0], sizes = [2, 32], strides = [1, 1]} : vector<2x64xf32> to vector<2x32xf32>
    %c6_53 = arith.constant 6 : index
    %c0_54 = arith.constant 0 : index
    %c0_55 = arith.constant 0 : index
    %227 = vector.load %arg8[%c6_53, %c0_54, %c0_55] : memref<8x2x64xf32, #tpu.memory_space<vmem>>, vector<1x2x32xf32>
    %228 = vector.shape_cast %227 : vector<1x2x32xf32> to vector<2x32xf32>
    %229 = vector.shape_cast %226 : vector<2x32xf32> to vector<1x2x32xf32>
    tpu.vector_store %arg8[%c6_53, %c0_54, %c0_55], %229 {strides = array<i32>} : memref<8x2x64xf32, #tpu.memory_space<vmem>>, vector<1x2x32xf32>,
    %230 = vector.extract_strided_slice %225 {offsets = [0, 32], sizes = [2, 32], strides = [1, 1]} : vector<2x64xf32> to vector<2x32xf32>
    %c1_56 = arith.constant 1 : index
    %c0_57 = arith.constant 0 : index
    %c32_58 = arith.constant 32 : index
    %231 = vector.load %arg8[%c1_56, %c0_57, %c32_58] : memref<8x2x64xf32, #tpu.memory_space<vmem>>, vector<1x2x32xf32>
    %232 = vector.shape_cast %231 : vector<1x2x32xf32> to vector<2x32xf32>
    %233 = vector.shape_cast %230 : vector<2x32xf32> to vector<1x2x32xf32>
    tpu.vector_store %arg8[%c1_56, %c0_57, %c32_58], %233 {strides = array<i32>} : memref<8x2x64xf32, #tpu.memory_space<vmem>>, vector<1x2x32xf32>,
    %234 = vector.extract_strided_slice %5 {offsets = [14, 0], sizes = [2, 256], strides = [1, 1]} : vector<16x256xf32> to vector<2x256xf32>
    %235 = vector.extract_strided_slice %5 {offsets = [0, 0], sizes = [2, 256], strides = [1, 1]} : vector<16x256xf32> to vector<2x256xf32>
    %236 = arith.subf %234, %235 : vector<2x256xf32>
    %237 = vector.broadcast %7 : vector<1x256xf32> to vector<2x256xf32>
    %238 = arith.mulf %237, %236 : vector<2x256xf32>
    %239 = arith.addf %235, %238 : vector<2x256xf32>
    %cst_59 = arith.constant dense<0.000000e+00> : vector<2x256xf32>
    %240 = tpu.matmul %225, %6, %cst_59 {dimension_numbers = #tpu.dot_dimension_numbers<[1], [0], [0], [1], [0, 0, 1, 1], [], []>} : vector<2x64xf32>, vector<64x256xf32>, vector<2x256xf32> -> vector<2x256xf32>
    %241 = arith.addf %239, %240 : vector<2x256xf32>
    %242 = vector.extract_strided_slice %241 {offsets = [0, 0], sizes = [2, 192], strides = [1, 1]} : vector<2x256xf32> to vector<2x192xf32>
    %243 = arith.negf %242 : vector<2x192xf32>
    %244 = math.exp %243 : vector<2x192xf32>
    %cst_60 = arith.constant 1.000000e+00 : f32
    %245 = vector.broadcast %cst_60 : f32 to vector<2x192xf32>
    %246 = arith.addf %245, %244 : vector<2x192xf32>
    %247 = arith.divf %245, %246 : vector<2x192xf32>
    %248 = vector.extract_strided_slice %241 {offsets = [0, 192], sizes = [2, 64], strides = [1, 1]} : vector<2x256xf32> to vector<2x64xf32>
    %249 = math.tanh %248 : vector<2x64xf32>
    %250 = vector.extract_strided_slice %247 {offsets = [0, 0], sizes = [2, 64], strides = [1, 1]} : vector<2x192xf32> to vector<2x64xf32>
    %251 = vector.extract_strided_slice %247 {offsets = [0, 64], sizes = [2, 64], strides = [1, 1]} : vector<2x192xf32> to vector<2x64xf32>
    %252 = vector.extract_strided_slice %247 {offsets = [0, 128], sizes = [2, 64], strides = [1, 1]} : vector<2x192xf32> to vector<2x64xf32>
    %253 = arith.mulf %251, %223 : vector<2x64xf32>
    %254 = arith.mulf %250, %249 : vector<2x64xf32>
    %255 = arith.addf %253, %254 : vector<2x64xf32>
    %256 = math.tanh %255 : vector<2x64xf32>
    %257 = arith.mulf %252, %256 : vector<2x64xf32>
    %258 = vector.extract_strided_slice %257 {offsets = [0, 0], sizes = [2, 32], strides = [1, 1]} : vector<2x64xf32> to vector<2x32xf32>
    %c7_61 = arith.constant 7 : index
    %c0_62 = arith.constant 0 : index
    %c0_63 = arith.constant 0 : index
    %259 = vector.load %arg8[%c7_61, %c0_62, %c0_63] : memref<8x2x64xf32, #tpu.memory_space<vmem>>, vector<1x2x32xf32>
    %260 = vector.shape_cast %259 : vector<1x2x32xf32> to vector<2x32xf32>
    %261 = vector.shape_cast %258 : vector<2x32xf32> to vector<1x2x32xf32>
    tpu.vector_store %arg8[%c7_61, %c0_62, %c0_63], %261 {strides = array<i32>} : memref<8x2x64xf32, #tpu.memory_space<vmem>>, vector<1x2x32xf32>,
    %262 = vector.extract_strided_slice %257 {offsets = [0, 32], sizes = [2, 32], strides = [1, 1]} : vector<2x64xf32> to vector<2x32xf32>
    %c0_64 = arith.constant 0 : index
    %c0_65 = arith.constant 0 : index
    %c32_66 = arith.constant 32 : index
    %263 = vector.load %arg8[%c0_64, %c0_65, %c32_66] : memref<8x2x64xf32, #tpu.memory_space<vmem>>, vector<1x2x32xf32>
    %264 = vector.shape_cast %263 : vector<1x2x32xf32> to vector<2x32xf32>
    %265 = vector.shape_cast %262 : vector<2x32xf32> to vector<1x2x32xf32>
    tpu.vector_store %arg8[%c0_64, %c0_65, %c32_66], %265 {strides = array<i32>} : memref<8x2x64xf32, #tpu.memory_space<vmem>>, vector<1x2x32xf32>,
    %c0_67 = arith.constant 0 : index
    %c0_68 = arith.constant 0 : index
    %c0_69 = arith.constant 0 : index
    %266 = vector.load %arg8[%c0_67, %c0_68, %c0_69] : memref<8x2x64xf32, #tpu.memory_space<vmem>>, vector<8x2x64xf32>
    %267 = vector.shape_cast %257 : vector<2x64xf32> to vector<1x2x64xf32>
    %268 = vector.broadcast %267 : vector<1x2x64xf32> to vector<8x2x64xf32>
    %269 = arith.mulf %266, %268 : vector<8x2x64xf32>
    %cst_70 = arith.constant dense<0.000000e+00> : vector<8x2xf32>
    %270 = vector.multi_reduction <add>, %269, %cst_70 [2] : vector<8x2x64xf32> to vector<8x2xf32>
    %271 = vector.shape_cast %270 : vector<8x2xf32> to vector<8x2x1xf32>
    %cst_71 = arith.constant dense<0xFF800000> : vector<2x1xf32>
    %272 = vector.multi_reduction <maximumf>, %271, %cst_71 [0] : vector<8x2x1xf32> to vector<2x1xf32>
    %273 = vector.shape_cast %272 : vector<2x1xf32> to vector<1x2x1xf32>
    %274 = vector.broadcast %273 : vector<1x2x1xf32> to vector<8x2x1xf32>
    %275 = arith.subf %271, %274 : vector<8x2x1xf32>
    %276 = math.exp %275 : vector<8x2x1xf32>
    %cst_72 = arith.constant dense<0.000000e+00> : vector<2x1xf32>
    %277 = vector.multi_reduction <add>, %276, %cst_72 [0] : vector<8x2x1xf32> to vector<2x1xf32>
    %278 = vector.shape_cast %277 : vector<2x1xf32> to vector<1x2x1xf32>
    %279 = vector.broadcast %278 : vector<1x2x1xf32> to vector<8x2x1xf32>
    %280 = arith.divf %276, %279 : vector<8x2x1xf32>
    %281 = vector.broadcast %280 : vector<8x2x1xf32> to vector<8x2x64xf32>
    %282 = arith.mulf %266, %281 : vector<8x2x64xf32>
    %cst_73 = arith.constant dense<0.000000e+00> : vector<2x64xf32>
    %283 = vector.multi_reduction <add>, %282, %cst_73 [0] : vector<8x2x64xf32> to vector<2x64xf32>
    %c0_74 = arith.constant 0 : index
    %c0_75 = arith.constant 0 : index
    %284 = vector.load %arg5[%c0_74, %c0_75] : memref<64x2xf32, #tpu.memory_space<vmem>>, vector<64x2xf32>
    %cst_76 = arith.constant dense<0.000000e+00> : vector<2x2xf32>
    %285 = tpu.matmul %283, %284, %cst_76 {dimension_numbers = #tpu.dot_dimension_numbers<[1], [0], [0], [1], [0, 0, 1, 1], [], []>} : vector<2x64xf32>, vector<64x2xf32>, vector<2x2xf32> -> vector<2x2xf32>
    %c0_77 = arith.constant 0 : index
    %c0_78 = arith.constant 0 : index
    %286 = vector.load %arg6[%c0_77, %c0_78] : memref<1x2xf32, #tpu.memory_space<vmem>>, vector<1x2xf32>
    %287 = vector.broadcast %286 : vector<1x2xf32> to vector<2x2xf32>
    %288 = arith.addf %285, %287 : vector<2x2xf32>
    %c0_79 = arith.constant 0 : index
    %c0_80 = arith.constant 0 : index
    %289 = vector.load %arg7[%c0_79, %c0_80] : memref<2x2xf32, #tpu.memory_space<vmem>>, vector<2x2xf32>
    tpu.vector_store %arg7[%c0_79, %c0_80], %288 {strides = array<i32>} : memref<2x2xf32, #tpu.memory_space<vmem>>, vector<2x2xf32>,
    return
  }
}

</mosaic_0001>

<llo_original>
// kernel: tpu_custom_call.1
$region0: #{tpu_custom_call.1}
  #allocation0 [shape = 'u32[]', space=smem, size = 0x4, offset = 0x4, fixed_abs, tag = 'smem constant byte address 0x4 - core index']
  #allocation1 [shape = 'u32[72,128]{1,0:T(1,128)}', space=vmem, size = 0x9000, scoped, tag = 'internal scratch']
  #allocation2 [shape = 'f32[8,2,64]{2,1,0:T(2,128)}', space=vmem, size = 0x2000, scoped, tag = 'scratch operand']
  %s0 = inlined_call_operand.hbm [shape: f32[16,32], index: 0, kind: input, shape index: {}]
  %s1 = inlined_call_operand.vmem [shape: f32[32,256], index: 1, kind: input, shape index: {}]
  %s2 = inlined_call_operand.hbm [shape: f32[64,256], index: 2, kind: input, shape index: {}]
  %s3 = inlined_call_operand.vmem [shape: f32[1,256], index: 3, kind: input, shape index: {}]
  %s4 = inlined_call_operand.hbm [shape: f32[1,256], index: 4, kind: input, shape index: {}]
  %s5 = inlined_call_operand.vmem [shape: f32[64,2], index: 5, kind: input, shape index: {}]
  %s6 = inlined_call_operand.vmem [shape: f32[1,2], index: 6, kind: input, shape index: {}]
  %s7 = inlined_call_operand.hbm [shape: f32[2,2], index: 7, kind: output, shape index: {}]
  %s8 = sld [smem:[#allocation0]]
  $region50: #{tpu_custom_call.1} parent=0
    _
  %s10 = ssub.s32 1, %s8
  %s11 = scalar_select 0, %s10, %s8
  $region1: #{tpu_custom_call.1} parent=0
    #allocation3 [shape = 'u8[8192]{0}', space=vmem, size = 0x2000, scoped, tag = 'input window, operand 0, single buffered']
    #allocation4 [shape = 's32[1]{0}', space=sflag, size = 0x4, scoped, tag = 'scoped memory for tpu_custom_call.1']
    #allocation5 [shape = 's32[1]{0}', space=sflag, size = 0x4, scoped, tag = 'scoped memory for tpu_custom_call.1']
    #allocation6 [shape = 'u8[65536]{0}', space=vmem, size = 0x10000, scoped, tag = 'input window, operand 2, single buffered']
    #allocation7 [shape = 's32[1]{0}', space=sflag, size = 0x4, scoped, tag = 'scoped memory for tpu_custom_call.1']
    #allocation8 [shape = 'u8[1024]{0}', space=vmem, size = 0x400, scoped, tag = 'input window, operand 4, single buffered']
    #allocation9 [shape = 'u8[1024]{0}', space=vmem, size = 0x400, scoped, tag = 'output window, operand 0, single buffered']
    %12 = vsyncpa [#allocation4], 0
    %13 = vsyncpa [#allocation7], 0
    %14 = vsyncpa [#allocation5], 0
    // Predicated region
    $region2: #{tpu_custom_call.1} parent=1 // pred_check
      _
    $region3: #{tpu_custom_call.1} parent=1 // pred_check_branch
      %16 = sbr.rel (0) target = $region5
    $region4: #{tpu_custom_call.1} parent=1 // pred_region
      %18 = vsyncadd [#allocation4], 0
      %s19 = sshll.u32 %s0, 4
      %s20 = int_to_ptr.hbm [resolvable:$true] %s19
      %s21 = sshll.u32 [#allocation3], 4
      %s22 = int_to_ptr.vmem [resolvable:$true] %s21
      %27 = dma.hbm_to_vmem [thread:$0]  %s20, 256, %s22, [#allocation4], 128, 128, 8
    $region5: #{tpu_custom_call.1} parent=1 // pred_fallthru
      _
    // Predicated region
    $region6: #{tpu_custom_call.1} parent=1 // pred_check
      _
    $region7: #{tpu_custom_call.1} parent=1 // pred_check_branch
      %29 = sbr.rel (0) target = $region9
    $region8: #{tpu_custom_call.1} parent=1 // pred_region
      _
    $region9: #{tpu_custom_call.1} parent=1 // pred_fallthru
      _
    // Predicated region
    $region10: #{tpu_custom_call.1} parent=1 // pred_check
      _
    $region11: #{tpu_custom_call.1} parent=1 // pred_check_branch
      %31 = sbr.rel (0) target = $region13
    $region12: #{tpu_custom_call.1} parent=1 // pred_region
      %33 = vsyncadd [#allocation7], 0
      %s34 = sshll.u32 %s2, 4
      %s35 = int_to_ptr.hbm [resolvable:$true] %s34
      %s36 = sshll.u32 [#allocation6], 4
      %s37 = int_to_ptr.vmem [resolvable:$true] %s36
      %42 = dma.hbm_to_vmem [thread:$0]  %s35, 2048, %s37, [#allocation7], 256, 256, 16
    $region13: #{tpu_custom_call.1} parent=1 // pred_fallthru
      _
    // Predicated region
    $region14: #{tpu_custom_call.1} parent=1 // pred_check
      _
    $region15: #{tpu_custom_call.1} parent=1 // pred_check_branch
      %44 = sbr.rel (0) target = $region17
    $region16: #{tpu_custom_call.1} parent=1 // pred_region
      _
    $region17: #{tpu_custom_call.1} parent=1 // pred_fallthru
      _
    // Predicated region
    $region18: #{tpu_custom_call.1} parent=1 // pred_check
      _
    $region19: #{tpu_custom_call.1} parent=1 // pred_check_branch
      %46 = sbr.rel (0) target = $region21
    $region20: #{tpu_custom_call.1} parent=1 // pred_region
      %48 = vsyncadd [#allocation7], 0
      %s50 = sshll.u32 %s4, 4
      %s51 = int_to_ptr.hbm [resolvable:$true] %s50
      %s52 = sshll.u32 [#allocation8], 4
      %s53 = int_to_ptr.vmem [resolvable:$true] %s52
      %55 = dma.hbm_to_vmem [thread:$0]  %s51, 32, %s53, [#allocation7]
    $region21: #{tpu_custom_call.1} parent=1 // pred_fallthru
      _
    // Predicated region
    $region22: #{tpu_custom_call.1} parent=1 // pred_check
      _
    $region23: #{tpu_custom_call.1} parent=1 // pred_check_branch
      %57 = sbr.rel (0) target = $region25
    $region24: #{tpu_custom_call.1} parent=1 // pred_region
      _
    $region25: #{tpu_custom_call.1} parent=1 // pred_fallthru
      _
    // Predicated region
    $region26: #{tpu_custom_call.1} parent=1 // pred_check
      _
    $region27: #{tpu_custom_call.1} parent=1 // pred_check_branch
      %59 = sbr.rel (0) target = $region29
    $region28: #{tpu_custom_call.1} parent=1 // pred_region
      _
    $region29: #{tpu_custom_call.1} parent=1 // pred_fallthru
      _
    // Predicated region
    $region30: #{tpu_custom_call.1} parent=1 // pred_check
      _
    $region31: #{tpu_custom_call.1} parent=1 // pred_check_branch
      %61 = sbr.rel (0) target = $region33
    $region32: #{tpu_custom_call.1} parent=1 // pred_region
      %63 = dma.done [#allocation4], 256
    $region33: #{tpu_custom_call.1} parent=1 // pred_fallthru
      _
    // Predicated region
    $region34: #{tpu_custom_call.1} parent=1 // pred_check
      _
    $region35: #{tpu_custom_call.1} parent=1 // pred_check_branch
      %65 = sbr.rel (0) target = $region37
    $region36: #{tpu_custom_call.1} parent=1 // pred_region
      %67 = dma.done [#allocation7], 2048
    $region37: #{tpu_custom_call.1} parent=1 // pred_fallthru
      _
    // Predicated region
    $region38: #{tpu_custom_call.1} parent=1 // pred_check
      _
    $region39: #{tpu_custom_call.1} parent=1 // pred_check_branch
      %69 = sbr.rel (0) target = $region41
    $region40: #{tpu_custom_call.1} parent=1 // pred_region
      %71 = dma.done [#allocation7], 32
    $region41: #{tpu_custom_call.1} parent=1 // pred_fallthru
      _
    %v72 = vld [vmem:[#allocation3] sm:$0xff]
    %v73 = vld [vmem:[#allocation3 + $0x8] sm:$0xff]
    %v74 = vld [vmem:[%s1] sm:$0xff]
    %v75 = vld [vmem:[%s1 + $0x8] sm:$0xff]
    %v76 = vld [vmem:[%s1 + $0x10] sm:$0xff]
    %v77 = vld [vmem:[%s1 + $0x18] sm:$0xff]
    %v78 = vld [vmem:[%s1 + $0x20] sm:$0xff]
    %v79 = vld [vmem:[%s1 + $0x28] sm:$0xff]
    %v80 = vld [vmem:[%s1 + $0x30] sm:$0xff]
    %v81 = vld [vmem:[%s1 + $0x38] sm:$0xff]
    %v82 = vld [vmem:[%s3] sm:$0x3]
    %v84 = vperm.slane %v82, 0
    %v85 = vperm.slane %v82, 1
    %vm88 = vcmask 261120
    %v90 = vsel %vm88, %v72, 0
    %v93 = vsel %vm88, %v73, 0
    %95 = vmatpush.msra.mxu0 0.0
    %96 = vmatpush.msra.mxu0 0.0
    %97 = vmatpush.msra.mxu0 0.0
    %98 = vmatpush.msra.mxu0 0.0
    %99 = vmatpush.msra.mxu0 0.0
    %100 = vmatpush.msra.mxu0 0.0
    %101 = vmatpush.msra.mxu0 0.0
    %102 = vmatpush.msra.mxu0 0.0
    %103 = vmatpush.msra.mxu0 0.0
    %104 = vmatpush.msra.mxu0 0.0
    %105 = vmatpush.msra.mxu0 0.0
    %106 = vmatpush.msra.mxu0 0.0
    %107 = vmatpush.msra.mxu0 %v80
    %108 = vmatpush.msra.mxu0 %v78
    %109 = vmatpush.msra.mxu0 %v76
    %110 = vmatpush.msra.mxu0 %v74
    %111 = vmatmul.f32.gmra.mxu0 %v90
    %v112 = vpop.f32.mrf.mxu0
    %v113 = vadd.f32 %v84, %v112
    %114 = vmatmul.f32.gmra.mxu0 %v93
    %v115 = vpop.f32.mrf.mxu0
    %v116 = vadd.f32 %v84, %v115
    %117 = vdwg.mxu0
    %118 = vmatpush.msra.mxu0 0.0
    %119 = vmatpush.msra.mxu0 0.0
    %120 = vmatpush.msra.mxu0 0.0
    %121 = vmatpush.msra.mxu0 0.0
    %122 = vmatpush.msra.mxu0 0.0
    %123 = vmatpush.msra.mxu0 0.0
    %124 = vmatpush.msra.mxu0 0.0
    %125 = vmatpush.msra.mxu0 0.0
    %126 = vmatpush.msra.mxu0 0.0
    %127 = vmatpush.msra.mxu0 0.0
    %128 = vmatpush.msra.mxu0 0.0
    %129 = vmatpush.msra.mxu0 0.0
    %130 = vmatpush.msra.mxu0 %v81
    %131 = vmatpush.msra.mxu0 %v79
    %132 = vmatpush.msra.mxu0 %v77
    %133 = vmatpush.msra.mxu0 %v75
    %134 = vmatmul.f32.gmra.mxu0 %v90
    %v135 = vpop.f32.mrf.mxu0
    %v136 = vadd.f32 %v85, %v135
    %137 = vmatmul.f32.gmra.mxu0 %v93
    %v138 = vpop.f32.mrf.mxu0
    %v139 = vadd.f32 %v85, %v138
    %140 = vdwg.mxu0
    %v141 = vld [vmem:[#allocation6] sm:$0xff]
    %v142 = vld [vmem:[#allocation6 + $0x8] sm:$0xff]
    %v143 = vld [vmem:[#allocation6 + $0x10] sm:$0xff]
    %v144 = vld [vmem:[#allocation6 + $0x18] sm:$0xff]
    %v145 = vld [vmem:[#allocation6 + $0x20] sm:$0xff]
    %v146 = vld [vmem:[#allocation6 + $0x28] sm:$0xff]
    %v147 = vld [vmem:[#allocation6 + $0x30] sm:$0xff]
    %v148 = vld [vmem:[#allocation6 + $0x38] sm:$0xff]
    %v149 = vld [vmem:[#allocation6 + $0x40] sm:$0xff]
    %v150 = vld [vmem:[#allocation6 + $0x48] sm:$0xff]
    %v151 = vld [vmem:[#allocation6 + $0x50] sm:$0xff]
    %v152 = vld [vmem:[#allocation6 + $0x58] sm:$0xff]
    %v153 = vld [vmem:[#allocation6 + $0x60] sm:$0xff]
    %v154 = vld [vmem:[#allocation6 + $0x68] sm:$0xff]
    %v155 = vld [vmem:[#allocation6 + $0x70] sm:$0xff]
    %v156 = vld [vmem:[#allocation6 + $0x78] sm:$0xff]
    %v157 = vld [vmem:[#allocation8] sm:$0x3]
    %v160 = vrot.slane %v116, 6
    %v161 = vrot.slane %v139, 6
    %v164 = vsub.f32 %v113, %v160
    %v165 = vsub.f32 %v136, %v161
    %v167 = vperm.slane %v157, 0
    %v168 = vperm.slane %v157, 1
    %v171 = vmul.f32 %v167, %v164
    %v172 = vmul.f32 %v168, %v165
    %v175 = vrot.slane %v171, 2
    %v176 = vrot.slane %v172, 2
    %v179 = vadd.f32 %v116, %v175
    %v180 = vadd.f32 %v139, %v176
    %vm181 = vcmask 523264
    %v183 = vsel %vm181, 0.0, 0
    %185 = vmatpush.msra.mxu0 0.0
    %186 = vmatpush.msra.mxu0 0.0
    %187 = vmatpush.msra.mxu0 0.0
    %188 = vmatpush.msra.mxu0 0.0
    %189 = vmatpush.msra.mxu0 0.0
    %190 = vmatpush.msra.mxu0 0.0
    %191 = vmatpush.msra.mxu0 0.0
    %192 = vmatpush.msra.mxu0 0.0
    %193 = vmatpush.msra.mxu0 %v155
    %194 = vmatpush.msra.mxu0 %v153
    %195 = vmatpush.msra.mxu0 %v151
    %196 = vmatpush.msra.mxu0 %v149
    %197 = vmatpush.msra.mxu0 %v147
    %198 = vmatpush.msra.mxu0 %v145
    %199 = vmatpush.msra.mxu0 %v143
    %200 = vmatpush.msra.mxu0 %v141
    %201 = vmatmul.f32.gmra.mxu0 %v183
    %v202 = vpop.f32.mrf.mxu0
    %v203 = vadd.f32 0.0, %v202
    %204 = vdwg.mxu0
    %205 = vmatpush.msra.mxu0 0.0
    %206 = vmatpush.msra.mxu0 0.0
    %207 = vmatpush.msra.mxu0 0.0
    %208 = vmatpush.msra.mxu0 0.0
    %209 = vmatpush.msra.mxu0 0.0
    %210 = vmatpush.msra.mxu0 0.0
    %211 = vmatpush.msra.mxu0 0.0
    %212 = vmatpush.msra.mxu0 0.0
    %213 = vmatpush.msra.mxu0 %v156
    %214 = vmatpush.msra.mxu0 %v154
    %215 = vmatpush.msra.mxu0 %v152
    %216 = vmatpush.msra.mxu0 %v150
    %217 = vmatpush.msra.mxu0 %v148
    %218 = vmatpush.msra.mxu0 %v146
    %219 = vmatpush.msra.mxu0 %v144
    %220 = vmatpush.msra.mxu0 %v142
    %221 = vmatmul.f32.gmra.mxu0 %v183
    %v222 = vpop.f32.mrf.mxu0
    %v223 = vadd.f32 0.0, %v222
    %224 = vdwg.mxu0
    %v227 = vrot.slane %v203, 2
    %v228 = vrot.slane %v223, 2
    %v231 = vadd.f32 %v179, %v227
    %v232 = vadd.f32 %v180, %v228
    %v233 = vxor.u32 %v231, 2147483648
    %v234 = vxor.u32 %v232, 2147483648
    %v235 = vmul.f32 %v233, 1.442695
    %v236 = vpow.pop %v235
    %v237 = vmul.f32 %v234, 1.442695
    %v238 = vpow.pop %v237
    %v239 = vadd.f32 %v236, 1.0
    %v240 = vadd.f32 %v238, 1.0
    %v241 = vrcp.pop %v239
    %v242 = vmul.f32 %v239, %v241
    %v243 = vsub.f32 1.0, %v242
    %v244 = vmul.f32 %v241, %v243
    %v245 = vadd.f32 %v241, %v244
    %vm246 = vweird.f32 %v239
    %vm247 = vweird.f32 %v241
    %vm248 = vmor %vm246, %vm247
    %v249 = vsel %vm248, %v241, %v245
    %v250 = vand.u32 2147483647, %v239
    %vm251 = vcmp.eq.f32.partialorder %v250, 8.507059e+37
    %v252 = vand.u32 %v239, 2147483648
    %v253 = vor.u32 1.1754944e-38, %v252
    %v254 = vsel %vm251, %v253, %v249
    %v255 = vmul.f32 1.0, %v254
    %v256 = vrcp.pop %v240
    %v257 = vmul.f32 %v240, %v256
    %v258 = vsub.f32 1.0, %v257
    %v259 = vmul.f32 %v256, %v258
    %v260 = vadd.f32 %v256, %v259
    %vm261 = vweird.f32 %v240
    %vm262 = vweird.f32 %v256
    %vm263 = vmor %vm261, %vm262
    %v264 = vsel %vm263, %v256, %v260
    %v265 = vand.u32 2147483647, %v240
    %vm266 = vcmp.eq.f32.partialorder %v265, 8.507059e+37
    %v267 = vand.u32 %v240, 2147483648
    %v268 = vor.u32 1.1754944e-38, %v267
    %v269 = vsel %vm266, %v268, %v264
    %v270 = vmul.f32 1.0, %v269
    %v271 = vtanh.pop %v232
    %v272 = vmul.f32 %v255, 0.0
    %274 = vrot.lane.b32.xlu0 %v271, 64
    %v275 = vpop.permute.xlu0 %274
    %v277 = vmul.f32 %v255, %v275
    %279 = vrot.lane.b32.xlu0 %v277, 64
    %v280 = vpop.permute.xlu0 %279
    %v282 = vadd.f32 %v272, %v280
    %v283 = vtanh.pop %v282
    %285 = vrot.lane.b32.xlu0 %v283, 64
    %v286 = vpop.permute.xlu0 %285
    %v288 = vmul.f32 %v270, %v286
    %vm289 = vcmask 261126
    %290 = vst.msk [vmem:[#allocation2 - $0x6] sm:$0xc0] %vm289, %v288
    %s291 = scalar_lea.vmem [#allocation2], 14
    %vm292 = vcmask 523526
    %293 = vst.msk [vmem:[%s291 - $0x6] sm:$0xc0] %vm292, %v288
    %v294 = vrot.slane %v116, 2
    %v295 = vrot.slane %v139, 2
    %v298 = vsub.f32 %v113, %v294
    %v299 = vsub.f32 %v136, %v295
    %v300 = vmul.f32 %v167, %v298
    %v301 = vmul.f32 %v168, %v299
    %v304 = vrot.slane %v300, 6
    %v305 = vrot.slane %v301, 6
    %v308 = vadd.f32 %v116, %v304
    %v309 = vadd.f32 %v139, %v305
    %v311 = vrot.slane %v288, 6
    %v312 = vsel %vm181, %v311, 0
    %314 = vmatpush.msra.mxu0 0.0
    %315 = vmatpush.msra.mxu0 0.0
    %316 = vmatpush.msra.mxu0 0.0
    %317 = vmatpush.msra.mxu0 0.0
    %318 = vmatpush.msra.mxu0 0.0
    %319 = vmatpush.msra.mxu0 0.0
    %320 = vmatpush.msra.mxu0 0.0
    %321 = vmatpush.msra.mxu0 0.0
    %322 = vmatpush.msra.mxu0 %v155
    %323 = vmatpush.msra.mxu0 %v153
    %324 = vmatpush.msra.mxu0 %v151
    %325 = vmatpush.msra.mxu0 %v149
    %326 = vmatpush.msra.mxu0 %v147
    %327 = vmatpush.msra.mxu0 %v145
    %328 = vmatpush.msra.mxu0 %v143
    %329 = vmatpush.msra.mxu0 %v141
    %330 = vmatmul.f32.gmra.mxu0 %v312
    %v331 = vpop.f32.mrf.mxu0
    %v332 = vadd.f32 0.0, %v331
    %333 = vdwg.mxu0
    %334 = vmatpush.msra.mxu0 0.0
    %335 = vmatpush.msra.mxu0 0.0
    %336 = vmatpush.msra.mxu0 0.0
    %337 = vmatpush.msra.mxu0 0.0
    %338 = vmatpush.msra.mxu0 0.0
    %339 = vmatpush.msra.mxu0 0.0
    %340 = vmatpush.msra.mxu0 0.0
    %341 = vmatpush.msra.mxu0 0.0
    %342 = vmatpush.msra.mxu0 %v156
    %343 = vmatpush.msra.mxu0 %v154
    %344 = vmatpush.msra.mxu0 %v152
    %345 = vmatpush.msra.mxu0 %v150
    %346 = vmatpush.msra.mxu0 %v148
    %347 = vmatpush.msra.mxu0 %v146
    %348 = vmatpush.msra.mxu0 %v144
    %349 = vmatpush.msra.mxu0 %v142
    %350 = vmatmul.f32.gmra.mxu0 %v312
    %v351 = vpop.f32.mrf.mxu0
    %v352 = vadd.f32 0.0, %v351
    %353 = vdwg.mxu0
    %v356 = vrot.slane %v332, 4
    %v357 = vrot.slane %v352, 4
    %v360 = vadd.f32 %v308, %v356
    %v361 = vadd.f32 %v309, %v357
    %v362 = vxor.u32 %v360, 2147483648
    %v363 = vxor.u32 %v361, 2147483648
    %v364 = vmul.f32 %v362, 1.442695
    %v365 = vpow.pop %v364
    %v366 = vmul.f32 %v363, 1.442695
    %v367 = vpow.pop %v366
    %v368 = vadd.f32 %v365, 1.0
    %v369 = vadd.f32 %v367, 1.0
    %v370 = vrcp.pop %v368
    %v371 = vmul.f32 %v368, %v370
    %v372 = vsub.f32 1.0, %v371
    %v373 = vmul.f32 %v370, %v372
    %v374 = vadd.f32 %v370, %v373
    %vm375 = vweird.f32 %v368
    %vm376 = vweird.f32 %v370
    %vm377 = vmor %vm375, %vm376
    %v378 = vsel %vm377, %v370, %v374
    %v379 = vand.u32 2147483647, %v368
    %vm380 = vcmp.eq.f32.partialorder %v379, 8.507059e+37
    %v381 = vand.u32 %v368, 2147483648
    %v382 = vor.u32 1.1754944e-38, %v381
    %v383 = vsel %vm380, %v382, %v378
    %v384 = vmul.f32 1.0, %v383
    %v385 = vrcp.pop %v369
    %v386 = vmul.f32 %v369, %v385
    %v387 = vsub.f32 1.0, %v386
    %v388 = vmul.f32 %v385, %v387
    %v389 = vadd.f32 %v385, %v388
    %vm390 = vweird.f32 %v369
    %vm391 = vweird.f32 %v385
    %vm392 = vmor %vm390, %vm391
    %v393 = vsel %vm392, %v385, %v389
    %v394 = vand.u32 2147483647, %v369
    %vm395 = vcmp.eq.f32.partialorder %v394, 8.507059e+37
    %v396 = vand.u32 %v369, 2147483648
    %v397 = vor.u32 1.1754944e-38, %v396
    %v398 = vsel %vm395, %v397, %v393
    %v399 = vmul.f32 1.0, %v398
    %v400 = vtanh.pop %v361
    %v402 = vrot.slane %v282, 2
    %v404 = vmul.f32 %v384, %v402
    %406 = vrot.lane.b32.xlu0 %v400, 64
    %v407 = vpop.permute.xlu0 %406
    %v409 = vmul.f32 %v384, %v407
    %411 = vrot.lane.b32.xlu0 %v409, 64
    %v412 = vpop.permute.xlu0 %411
    %v414 = vadd.f32 %v404, %v412
    %v415 = vtanh.pop %v414
    %417 = vrot.lane.b32.xlu0 %v415, 64
    %v418 = vpop.permute.xlu0 %417
    %v420 = vmul.f32 %v399, %v418
    %s421 = scalar_lea.vmem [#allocation2], 2
    %vm422 = vcmask 259076
    %423 = vst.msk [vmem:[%s421 - $0x4] sm:$0x30] %vm422, %v420
    %s424 = scalar_lea.vmem [#allocation2], 12
    %vm425 = vcmask 521476
    %426 = vst.msk [vmem:[%s424 - $0x4] sm:$0x30] %vm425, %v420
    %v428 = vrot.slane %v420, 4
    %v429 = vsel %vm181, %v428, 0
    %431 = vmatpush.msra.mxu0 0.0
    %432 = vmatpush.msra.mxu0 0.0
    %433 = vmatpush.msra.mxu0 0.0
    %434 = vmatpush.msra.mxu0 0.0
    %435 = vmatpush.msra.mxu0 0.0
    %436 = vmatpush.msra.mxu0 0.0
    %437 = vmatpush.msra.mxu0 0.0
    %438 = vmatpush.msra.mxu0 0.0
    %439 = vmatpush.msra.mxu0 %v155
    %440 = vmatpush.msra.mxu0 %v153
    %441 = vmatpush.msra.mxu0 %v151
    %442 = vmatpush.msra.mxu0 %v149
    %443 = vmatpush.msra.mxu0 %v147
    %444 = vmatpush.msra.mxu0 %v145
    %445 = vmatpush.msra.mxu0 %v143
    %446 = vmatpush.msra.mxu0 %v141
    %447 = vmatmul.f32.gmra.mxu0 %v429
    %v448 = vpop.f32.mrf.mxu0
    %v449 = vadd.f32 0.0, %v448
    %450 = vdwg.mxu0
    %451 = vmatpush.msra.mxu0 0.0
    %452 = vmatpush.msra.mxu0 0.0
    %453 = vmatpush.msra.mxu0 0.0
    %454 = vmatpush.msra.mxu0 0.0
    %455 = vmatpush.msra.mxu0 0.0
    %456 = vmatpush.msra.mxu0 0.0
    %457 = vmatpush.msra.mxu0 0.0
    %458 = vmatpush.msra.mxu0 0.0
    %459 = vmatpush.msra.mxu0 %v156
    %460 = vmatpush.msra.mxu0 %v154
    %461 = vmatpush.msra.mxu0 %v152
    %462 = vmatpush.msra.mxu0 %v150
    %463 = vmatpush.msra.mxu0 %v148
    %464 = vmatpush.msra.mxu0 %v146
    %465 = vmatpush.msra.mxu0 %v144
    %466 = vmatpush.msra.mxu0 %v142
    %467 = vmatmul.f32.gmra.mxu0 %v429
    %v468 = vpop.f32.mrf.mxu0
    %v469 = vadd.f32 0.0, %v468
    %470 = vdwg.mxu0
    %v473 = vrot.slane %v449, 6
    %v474 = vrot.slane %v469, 6
    %v477 = vadd.f32 %v179, %v473
    %v478 = vadd.f32 %v180, %v474
    %v479 = vxor.u32 %v477, 2147483648
    %v480 = vxor.u32 %v478, 2147483648
    %v481 = vmul.f32 %v479, 1.442695
    %v482 = vpow.pop %v481
    %v483 = vmul.f32 %v480, 1.442695
    %v484 = vpow.pop %v483
    %v485 = vadd.f32 %v482, 1.0
    %v486 = vadd.f32 %v484, 1.0
    %v487 = vrcp.pop %v485
    %v488 = vmul.f32 %v485, %v487
    %v489 = vsub.f32 1.0, %v488
    %v490 = vmul.f32 %v487, %v489
    %v491 = vadd.f32 %v487, %v490
    %vm492 = vweird.f32 %v485
    %vm493 = vweird.f32 %v487
    %vm494 = vmor %vm492, %vm493
    %v495 = vsel %vm494, %v487, %v491
    %v496 = vand.u32 2147483647, %v485
    %vm497 = vcmp.eq.f32.partialorder %v496, 8.507059e+37
    %v498 = vand.u32 %v485, 2147483648
    %v499 = vor.u32 1.1754944e-38, %v498
    %v500 = vsel %vm497, %v499, %v495
    %v501 = vmul.f32 1.0, %v500
    %v502 = vrcp.pop %v486
    %v503 = vmul.f32 %v486, %v502
    %v504 = vsub.f32 1.0, %v503
    %v505 = vmul.f32 %v502, %v504
    %v506 = vadd.f32 %v502, %v505
    %vm507 = vweird.f32 %v486
    %vm508 = vweird.f32 %v502
    %vm509 = vmor %vm507, %vm508
    %v510 = vsel %vm509, %v502, %v506
    %v511 = vand.u32 2147483647, %v486
    %vm512 = vcmp.eq.f32.partialorder %v511, 8.507059e+37
    %v513 = vand.u32 %v486, 2147483648
    %v514 = vor.u32 1.1754944e-38, %v513
    %v515 = vsel %vm512, %v514, %v510
    %v516 = vmul.f32 1.0, %v515
    %v517 = vtanh.pop %v478
    %v519 = vrot.slane %v414, 2
    %v521 = vmul.f32 %v501, %v519
    %523 = vrot.lane.b32.xlu0 %v517, 64
    %v524 = vpop.permute.xlu0 %523
    %v526 = vmul.f32 %v501, %v524
    %528 = vrot.lane.b32.xlu0 %v526, 64
    %v529 = vpop.permute.xlu0 %528
    %v531 = vadd.f32 %v521, %v529
    %v532 = vtanh.pop %v531
    %534 = vrot.lane.b32.xlu0 %v532, 64
    %v535 = vpop.permute.xlu0 %534
    %v537 = vmul.f32 %v516, %v535
    %s538 = scalar_lea.vmem [#allocation2], 4
    %vm539 = vcmask 257026
    %540 = vst.msk [vmem:[%s538 - $0x2] sm:$0xc] %vm539, %v537
    %s541 = scalar_lea.vmem [#allocation2], 10
    %vm542 = vcmask 519426
    %543 = vst.msk [vmem:[%s541 - $0x2] sm:$0xc] %vm542, %v537
    %v545 = vrot.slane %v537, 2
    %v546 = vsel %vm181, %v545, 0
    %548 = vmatpush.msra.mxu0 0.0
    %549 = vmatpush.msra.mxu0 0.0
    %550 = vmatpush.msra.mxu0 0.0
    %551 = vmatpush.msra.mxu0 0.0
    %552 = vmatpush.msra.mxu0 0.0
    %553 = vmatpush.msra.mxu0 0.0
    %554 = vmatpush.msra.mxu0 0.0
    %555 = vmatpush.msra.mxu0 0.0
    %556 = vmatpush.msra.mxu0 %v155
    %557 = vmatpush.msra.mxu0 %v153
    %558 = vmatpush.msra.mxu0 %v151
    %559 = vmatpush.msra.mxu0 %v149
    %560 = vmatpush.msra.mxu0 %v147
    %561 = vmatpush.msra.mxu0 %v145
    %562 = vmatpush.msra.mxu0 %v143
    %563 = vmatpush.msra.mxu0 %v141
    %564 = vmatmul.f32.gmra.mxu0 %v546
    %v565 = vpop.f32.mrf.mxu0
    %v566 = vadd.f32 0.0, %v565
    %567 = vdwg.mxu0
    %568 = vmatpush.msra.mxu0 0.0
    %569 = vmatpush.msra.mxu0 0.0
    %570 = vmatpush.msra.mxu0 0.0
    %571 = vmatpush.msra.mxu0 0.0
    %572 = vmatpush.msra.mxu0 0.0
    %573 = vmatpush.msra.mxu0 0.0
    %574 = vmatpush.msra.mxu0 0.0
    %575 = vmatpush.msra.mxu0 0.0
    %576 = vmatpush.msra.mxu0 %v156
    %577 = vmatpush.msra.mxu0 %v154
    %578 = vmatpush.msra.mxu0 %v152
    %579 = vmatpush.msra.mxu0 %v150
    %580 = vmatpush.msra.mxu0 %v148
    %581 = vmatpush.msra.mxu0 %v146
    %582 = vmatpush.msra.mxu0 %v144
    %583 = vmatpush.msra.mxu0 %v142
    %584 = vmatmul.f32.gmra.mxu0 %v546
    %v585 = vpop.f32.mrf.mxu0
    %v586 = vadd.f32 0.0, %v585
    %587 = vdwg.mxu0
    %v588 = vadd.f32 %v308, %v566
    %v589 = vadd.f32 %v309, %v586
    %v590 = vxor.u32 %v588, 2147483648
    %v591 = vxor.u32 %v589, 2147483648
    %v592 = vmul.f32 %v590, 1.442695
    %v593 = vpow.pop %v592
    %v594 = vmul.f32 %v591, 1.442695
    %v595 = vpow.pop %v594
    %v596 = vadd.f32 %v593, 1.0
    %v597 = vadd.f32 %v595, 1.0
    %v598 = vrcp.pop %v596
    %v599 = vmul.f32 %v596, %v598
    %v600 = vsub.f32 1.0, %v599
    %v601 = vmul.f32 %v598, %v600
    %v602 = vadd.f32 %v598, %v601
    %vm603 = vweird.f32 %v596
    %vm604 = vweird.f32 %v598
    %vm605 = vmor %vm603, %vm604
    %v606 = vsel %vm605, %v598, %v602
    %v607 = vand.u32 2147483647, %v596
    %vm608 = vcmp.eq.f32.partialorder %v607, 8.507059e+37
    %v609 = vand.u32 %v596, 2147483648
    %v610 = vor.u32 1.1754944e-38, %v609
    %v611 = vsel %vm608, %v610, %v606
    %v612 = vmul.f32 1.0, %v611
    %v613 = vrcp.pop %v597
    %v614 = vmul.f32 %v597, %v613
    %v615 = vsub.f32 1.0, %v614
    %v616 = vmul.f32 %v613, %v615
    %v617 = vadd.f32 %v613, %v616
    %vm618 = vweird.f32 %v597
    %vm619 = vweird.f32 %v613
    %vm620 = vmor %vm618, %vm619
    %v621 = vsel %vm620, %v613, %v617
    %v622 = vand.u32 2147483647, %v597
    %vm623 = vcmp.eq.f32.partialorder %v622, 8.507059e+37
    %v624 = vand.u32 %v597, 2147483648
    %v625 = vor.u32 1.1754944e-38, %v624
    %v626 = vsel %vm623, %v625, %v621
    %v627 = vmul.f32 1.0, %v626
    %v628 = vtanh.pop %v589
    %v630 = vrot.slane %v531, 2
    %v632 = vmul.f32 %v612, %v630
    %634 = vrot.lane.b32.xlu0 %v628, 64
    %v635 = vpop.permute.xlu0 %634
    %v637 = vmul.f32 %v612, %v635
    %639 = vrot.lane.b32.xlu0 %v637, 64
    %v640 = vpop.permute.xlu0 %639
    %v642 = vadd.f32 %v632, %v640
    %v643 = vtanh.pop %v642
    %645 = vrot.lane.b32.xlu0 %v643, 64
    %v646 = vpop.permute.xlu0 %645
    %v648 = vmul.f32 %v627, %v646
    %s649 = scalar_lea.vmem [#allocation2], 6
    %vm650 = vcmask 254976
    %651 = vst.msk [vmem:[%s649] sm:$0x3] %vm650, %v648
    %s652 = scalar_lea.vmem [#allocation2], 8
    %vm653 = vcmask 517376
    %654 = vst.msk [vmem:[%s652] sm:$0x3] %vm653, %v648
    %v657 = vrot.slane %v113, 6
    %v658 = vrot.slane %v136, 6
    %v661 = vsub.f32 %v116, %v657
    %v662 = vsub.f32 %v139, %v658
    %v663 = vmul.f32 %v167, %v661
    %v664 = vmul.f32 %v168, %v662
    %v667 = vrot.slane %v663, 2
    %v668 = vrot.slane %v664, 2
    %v671 = vadd.f32 %v113, %v667
    %v672 = vadd.f32 %v136, %v668
    %v674 = vsel %vm181, %v648, 0
    %676 = vmatpush.msra.mxu0 0.0
    %677 = vmatpush.msra.mxu0 0.0
    %678 = vmatpush.msra.mxu0 0.0
    %679 = vmatpush.msra.mxu0 0.0
    %680 = vmatpush.msra.mxu0 0.0
    %681 = vmatpush.msra.mxu0 0.0
    %682 = vmatpush.msra.mxu0 0.0
    %683 = vmatpush.msra.mxu0 0.0
    %684 = vmatpush.msra.mxu0 %v155
    %685 = vmatpush.msra.mxu0 %v153
    %686 = vmatpush.msra.mxu0 %v151
    %687 = vmatpush.msra.mxu0 %v149
    %688 = vmatpush.msra.mxu0 %v147
    %689 = vmatpush.msra.mxu0 %v145
    %690 = vmatpush.msra.mxu0 %v143
    %691 = vmatpush.msra.mxu0 %v141
    %692 = vmatmul.f32.gmra.mxu0 %v674
    %v693 = vpop.f32.mrf.mxu0
    %v694 = vadd.f32 0.0, %v693
    %695 = vdwg.mxu0
    %696 = vmatpush.msra.mxu0 0.0
    %697 = vmatpush.msra.mxu0 0.0
    %698 = vmatpush.msra.mxu0 0.0
    %699 = vmatpush.msra.mxu0 0.0
    %700 = vmatpush.msra.mxu0 0.0
    %701 = vmatpush.msra.mxu0 0.0
    %702 = vmatpush.msra.mxu0 0.0
    %703 = vmatpush.msra.mxu0 0.0
    %704 = vmatpush.msra.mxu0 %v156
    %705 = vmatpush.msra.mxu0 %v154
    %706 = vmatpush.msra.mxu0 %v152
    %707 = vmatpush.msra.mxu0 %v150
    %708 = vmatpush.msra.mxu0 %v148
    %709 = vmatpush.msra.mxu0 %v146
    %710 = vmatpush.msra.mxu0 %v144
    %711 = vmatpush.msra.mxu0 %v142
    %712 = vmatmul.f32.gmra.mxu0 %v674
    %v713 = vpop.f32.mrf.mxu0
    %v714 = vadd.f32 0.0, %v713
    %715 = vdwg.mxu0
    %v718 = vrot.slane %v694, 2
    %v719 = vrot.slane %v714, 2
    %v722 = vadd.f32 %v671, %v718
    %v723 = vadd.f32 %v672, %v719
    %v724 = vxor.u32 %v722, 2147483648
    %v725 = vxor.u32 %v723, 2147483648
    %v726 = vmul.f32 %v724, 1.442695
    %v727 = vpow.pop %v726
    %v728 = vmul.f32 %v725, 1.442695
    %v729 = vpow.pop %v728
    %v730 = vadd.f32 %v727, 1.0
    %v731 = vadd.f32 %v729, 1.0
    %v732 = vrcp.pop %v730
    %v733 = vmul.f32 %v730, %v732
    %v734 = vsub.f32 1.0, %v733
    %v735 = vmul.f32 %v732, %v734
    %v736 = vadd.f32 %v732, %v735
    %vm737 = vweird.f32 %v730
    %vm738 = vweird.f32 %v732
    %vm739 = vmor %vm737, %vm738
    %v740 = vsel %vm739, %v732, %v736
    %v741 = vand.u32 2147483647, %v730
    %vm742 = vcmp.eq.f32.partialorder %v741, 8.507059e+37
    %v743 = vand.u32 %v730, 2147483648
    %v744 = vor.u32 1.1754944e-38, %v743
    %v745 = vsel %vm742, %v744, %v740
    %v746 = vmul.f32 1.0, %v745
    %v747 = vrcp.pop %v731
    %v748 = vmul.f32 %v731, %v747
    %v749 = vsub.f32 1.0, %v748
    %v750 = vmul.f32 %v747, %v749
    %v751 = vadd.f32 %v747, %v750
    %vm752 = vweird.f32 %v731
    %vm753 = vweird.f32 %v747
    %vm754 = vmor %vm752, %vm753
    %v755 = vsel %vm754, %v747, %v751
    %v756 = vand.u32 2147483647, %v731
    %vm757 = vcmp.eq.f32.partialorder %v756, 8.507059e+37
    %v758 = vand.u32 %v731, 2147483648
    %v759 = vor.u32 1.1754944e-38, %v758
    %v760 = vsel %vm757, %v759, %v755
    %v761 = vmul.f32 1.0, %v760
    %v762 = vtanh.pop %v723
    %v764 = vrot.slane %v642, 2
    %v766 = vmul.f32 %v746, %v764
    %768 = vrot.lane.b32.xlu0 %v762, 64
    %v769 = vpop.permute.xlu0 %768
    %v771 = vmul.f32 %v746, %v769
    %773 = vrot.lane.b32.xlu0 %v771, 64
    %v774 = vpop.permute.xlu0 %773
    %v776 = vadd.f32 %v766, %v774
    %v777 = vtanh.pop %v776
    %779 = vrot.lane.b32.xlu0 %v777, 64
    %v780 = vpop.permute.xlu0 %779
    %v782 = vmul.f32 %v761, %v780
    %783 = vst.msk [vmem:[%s652 - $0x6] sm:$0xc0] %vm289, %v782
    %784 = vst.msk [vmem:[%s649 - $0x6] sm:$0xc0] %vm292, %v782
    %v785 = vrot.slane %v113, 2
    %v786 = vrot.slane %v136, 2
    %v789 = vsub.f32 %v116, %v785
    %v790 = vsub.f32 %v139, %v786
    %v791 = vmul.f32 %v167, %v789
    %v792 = vmul.f32 %v168, %v790
    %v795 = vrot.slane %v791, 6
    %v796 = vrot.slane %v792, 6
    %v799 = vadd.f32 %v113, %v795
    %v800 = vadd.f32 %v136, %v796
    %v802 = vrot.slane %v782, 6
    %v803 = vsel %vm181, %v802, 0
    %805 = vmatpush.msra.mxu0 0.0
    %806 = vmatpush.msra.mxu0 0.0
    %807 = vmatpush.msra.mxu0 0.0
    %808 = vmatpush.msra.mxu0 0.0
    %809 = vmatpush.msra.mxu0 0.0
    %810 = vmatpush.msra.mxu0 0.0
    %811 = vmatpush.msra.mxu0 0.0
    %812 = vmatpush.msra.mxu0 0.0
    %813 = vmatpush.msra.mxu0 %v155
    %814 = vmatpush.msra.mxu0 %v153
    %815 = vmatpush.msra.mxu0 %v151
    %816 = vmatpush.msra.mxu0 %v149
    %817 = vmatpush.msra.mxu0 %v147
    %818 = vmatpush.msra.mxu0 %v145
    %819 = vmatpush.msra.mxu0 %v143
    %820 = vmatpush.msra.mxu0 %v141
    %821 = vmatmul.f32.gmra.mxu0 %v803
    %v822 = vpop.f32.mrf.mxu0
    %v823 = vadd.f32 0.0, %v822
    %824 = vdwg.mxu0
    %825 = vmatpush.msra.mxu0 0.0
    %826 = vmatpush.msra.mxu0 0.0
    %827 = vmatpush.msra.mxu0 0.0
    %828 = vmatpush.msra.mxu0 0.0
    %829 = vmatpush.msra.mxu0 0.0
    %830 = vmatpush.msra.mxu0 0.0
    %831 = vmatpush.msra.mxu0 0.0
    %832 = vmatpush.msra.mxu0 0.0
    %833 = vmatpush.msra.mxu0 %v156
    %834 = vmatpush.msra.mxu0 %v154
    %835 = vmatpush.msra.mxu0 %v152
    %836 = vmatpush.msra.mxu0 %v150
    %837 = vmatpush.msra.mxu0 %v148
    %838 = vmatpush.msra.mxu0 %v146
    %839 = vmatpush.msra.mxu0 %v144
    %840 = vmatpush.msra.mxu0 %v142
    %841 = vmatmul.f32.gmra.mxu0 %v803
    %v842 = vpop.f32.mrf.mxu0
    %v843 = vadd.f32 0.0, %v842
    %844 = vdwg.mxu0
    %v847 = vrot.slane %v823, 4
    %v848 = vrot.slane %v843, 4
    %v851 = vadd.f32 %v799, %v847
    %v852 = vadd.f32 %v800, %v848
    %v853 = vxor.u32 %v851, 2147483648
    %v854 = vxor.u32 %v852, 2147483648
    %v855 = vmul.f32 %v853, 1.442695
    %v856 = vpow.pop %v855
    %v857 = vmul.f32 %v854, 1.442695
    %v858 = vpow.pop %v857
    %v859 = vadd.f32 %v856, 1.0
    %v860 = vadd.f32 %v858, 1.0
    %v861 = vrcp.pop %v859
    %v862 = vmul.f32 %v859, %v861
    %v863 = vsub.f32 1.0, %v862
    %v864 = vmul.f32 %v861, %v863
    %v865 = vadd.f32 %v861, %v864
    %vm866 = vweird.f32 %v859
    %vm867 = vweird.f32 %v861
    %vm868 = vmor %vm866, %vm867
    %v869 = vsel %vm868, %v861, %v865
    %v870 = vand.u32 2147483647, %v859
    %vm871 = vcmp.eq.f32.partialorder %v870, 8.507059e+37
    %v872 = vand.u32 %v859, 2147483648
    %v873 = vor.u32 1.1754944e-38, %v872
    %v874 = vsel %vm871, %v873, %v869
    %v875 = vmul.f32 1.0, %v874
    %v876 = vrcp.pop %v860
    %v877 = vmul.f32 %v860, %v876
    %v878 = vsub.f32 1.0, %v877
    %v879 = vmul.f32 %v876, %v878
    %v880 = vadd.f32 %v876, %v879
    %vm881 = vweird.f32 %v860
    %vm882 = vweird.f32 %v876
    %vm883 = vmor %vm881, %vm882
    %v884 = vsel %vm883, %v876, %v880
    %v885 = vand.u32 2147483647, %v860
    %vm886 = vcmp.eq.f32.partialorder %v885, 8.507059e+37
    %v887 = vand.u32 %v860, 2147483648
    %v888 = vor.u32 1.1754944e-38, %v887
    %v889 = vsel %vm886, %v888, %v884
    %v890 = vmul.f32 1.0, %v889
    %v891 = vtanh.pop %v852
    %v893 = vrot.slane %v776, 2
    %v895 = vmul.f32 %v875, %v893
    %897 = vrot.lane.b32.xlu0 %v891, 64
    %v898 = vpop.permute.xlu0 %897
    %v900 = vmul.f32 %v875, %v898
    %902 = vrot.lane.b32.xlu0 %v900, 64
    %v903 = vpop.permute.xlu0 %902
    %v905 = vadd.f32 %v895, %v903
    %v906 = vtanh.pop %v905
    %908 = vrot.lane.b32.xlu0 %v906, 64
    %v909 = vpop.permute.xlu0 %908
    %v911 = vmul.f32 %v890, %v909
    %912 = vst.msk [vmem:[%s541 - $0x4] sm:$0x30] %vm422, %v911
    %913 = vst.msk [vmem:[%s538 - $0x4] sm:$0x30] %vm425, %v911
    %v915 = vrot.slane %v911, 4
    %v916 = vsel %vm181, %v915, 0
    %918 = vmatpush.msra.mxu0 0.0
    %919 = vmatpush.msra.mxu0 0.0
    %920 = vmatpush.msra.mxu0 0.0
    %921 = vmatpush.msra.mxu0 0.0
    %922 = vmatpush.msra.mxu0 0.0
    %923 = vmatpush.msra.mxu0 0.0
    %924 = vmatpush.msra.mxu0 0.0
    %925 = vmatpush.msra.mxu0 0.0
    %926 = vmatpush.msra.mxu0 %v155
    %927 = vmatpush.msra.mxu0 %v153
    %928 = vmatpush.msra.mxu0 %v151
    %929 = vmatpush.msra.mxu0 %v149
    %930 = vmatpush.msra.mxu0 %v147
    %931 = vmatpush.msra.mxu0 %v145
    %932 = vmatpush.msra.mxu0 %v143
    %933 = vmatpush.msra.mxu0 %v141
    %934 = vmatmul.f32.gmra.mxu0 %v916
    %v935 = vpop.f32.mrf.mxu0
    %v936 = vadd.f32 0.0, %v935
    %937 = vdwg.mxu0
    %938 = vmatpush.msra.mxu0 0.0
    %939 = vmatpush.msra.mxu0 0.0
    %940 = vmatpush.msra.mxu0 0.0
    %941 = vmatpush.msra.mxu0 0.0
    %942 = vmatpush.msra.mxu0 0.0
    %943 = vmatpush.msra.mxu0 0.0
    %944 = vmatpush.msra.mxu0 0.0
    %945 = vmatpush.msra.mxu0 0.0
    %946 = vmatpush.msra.mxu0 %v156
    %947 = vmatpush.msra.mxu0 %v154
    %948 = vmatpush.msra.mxu0 %v152
    %949 = vmatpush.msra.mxu0 %v150
    %950 = vmatpush.msra.mxu0 %v148
    %951 = vmatpush.msra.mxu0 %v146
    %952 = vmatpush.msra.mxu0 %v144
    %953 = vmatpush.msra.mxu0 %v142
    %954 = vmatmul.f32.gmra.mxu0 %v916
    %v955 = vpop.f32.mrf.mxu0
    %v956 = vadd.f32 0.0, %v955
    %957 = vdwg.mxu0
    %v960 = vrot.slane %v936, 6
    %v961 = vrot.slane %v956, 6
    %v964 = vadd.f32 %v671, %v960
    %v965 = vadd.f32 %v672, %v961
    %v966 = vxor.u32 %v964, 2147483648
    %v967 = vxor.u32 %v965, 2147483648
    %v968 = vmul.f32 %v966, 1.442695
    %v969 = vpow.pop %v968
    %v970 = vmul.f32 %v967, 1.442695
    %v971 = vpow.pop %v970
    %v972 = vadd.f32 %v969, 1.0
    %v973 = vadd.f32 %v971, 1.0
    %v974 = vrcp.pop %v972
    %v975 = vmul.f32 %v972, %v974
    %v976 = vsub.f32 1.0, %v975
    %v977 = vmul.f32 %v974, %v976
    %v978 = vadd.f32 %v974, %v977
    %vm979 = vweird.f32 %v972
    %vm980 = vweird.f32 %v974
    %vm981 = vmor %vm979, %vm980
    %v982 = vsel %vm981, %v974, %v978
    %v983 = vand.u32 2147483647, %v972
    %vm984 = vcmp.eq.f32.partialorder %v983, 8.507059e+37
    %v985 = vand.u32 %v972, 2147483648
    %v986 = vor.u32 1.1754944e-38, %v985
    %v987 = vsel %vm984, %v986, %v982
    %v988 = vmul.f32 1.0, %v987
    %v989 = vrcp.pop %v973
    %v990 = vmul.f32 %v973, %v989
    %v991 = vsub.f32 1.0, %v990
    %v992 = vmul.f32 %v989, %v991
    %v993 = vadd.f32 %v989, %v992
    %vm994 = vweird.f32 %v973
    %vm995 = vweird.f32 %v989
    %vm996 = vmor %vm994, %vm995
    %v997 = vsel %vm996, %v989, %v993
    %v998 = vand.u32 2147483647, %v973
    %vm999 = vcmp.eq.f32.partialorder %v998, 8.507059e+37
    %v1000 = vand.u32 %v973, 2147483648
    %v1001 = vor.u32 1.1754944e-38, %v1000
    %v1002 = vsel %vm999, %v1001, %v997
    %v1003 = vmul.f32 1.0, %v1002
    %v1004 = vtanh.pop %v965
    %v1006 = vrot.slane %v905, 2
    %v1008 = vmul.f32 %v988, %v1006
    %1010 = vrot.lane.b32.xlu0 %v1004, 64
    %v1011 = vpop.permute.xlu0 %1010
    %v1013 = vmul.f32 %v988, %v1011
    %1015 = vrot.lane.b32.xlu0 %v1013, 64
    %v1016 = vpop.permute.xlu0 %1015
    %v1018 = vadd.f32 %v1008, %v1016
    %v1019 = vtanh.pop %v1018
    %1021 = vrot.lane.b32.xlu0 %v1019, 64
    %v1022 = vpop.permute.xlu0 %1021
    %v1024 = vmul.f32 %v1003, %v1022
    %1025 = vst.msk [vmem:[%s424 - $0x2] sm:$0xc] %vm539, %v1024
    %1026 = vst.msk [vmem:[%s421 - $0x2] sm:$0xc] %vm542, %v1024
    %v1028 = vrot.slane %v1024, 2
    %v1029 = vsel %vm181, %v1028, 0
    %1031 = vmatpush.msra.mxu0 0.0
    %1032 = vmatpush.msra.mxu0 0.0
    %1033 = vmatpush.msra.mxu0 0.0
    %1034 = vmatpush.msra.mxu0 0.0
    %1035 = vmatpush.msra.mxu0 0.0
    %1036 = vmatpush.msra.mxu0 0.0
    %1037 = vmatpush.msra.mxu0 0.0
    %1038 = vmatpush.msra.mxu0 0.0
    %1039 = vmatpush.msra.mxu0 %v155
    %1040 = vmatpush.msra.mxu0 %v153
    %1041 = vmatpush.msra.mxu0 %v151
    %1042 = vmatpush.msra.mxu0 %v149
    %1043 = vmatpush.msra.mxu0 %v147
    %1044 = vmatpush.msra.mxu0 %v145
    %1045 = vmatpush.msra.mxu0 %v143
    %1046 = vmatpush.msra.mxu0 %v141
    %1047 = vmatmul.f32.gmra.mxu0 %v1029
    %v1048 = vpop.f32.mrf.mxu0
    %v1049 = vadd.f32 0.0, %v1048
    %1050 = vdwg.mxu0
    %1051 = vmatpush.msra.mxu0 0.0
    %1052 = vmatpush.msra.mxu0 0.0
    %1053 = vmatpush.msra.mxu0 0.0
    %1054 = vmatpush.msra.mxu0 0.0
    %1055 = vmatpush.msra.mxu0 0.0
    %1056 = vmatpush.msra.mxu0 0.0
    %1057 = vmatpush.msra.mxu0 0.0
    %1058 = vmatpush.msra.mxu0 0.0
    %1059 = vmatpush.msra.mxu0 %v156
    %1060 = vmatpush.msra.mxu0 %v154
    %1061 = vmatpush.msra.mxu0 %v152
    %1062 = vmatpush.msra.mxu0 %v150
    %1063 = vmatpush.msra.mxu0 %v148
    %1064 = vmatpush.msra.mxu0 %v146
    %1065 = vmatpush.msra.mxu0 %v144
    %1066 = vmatpush.msra.mxu0 %v142
    %1067 = vmatmul.f32.gmra.mxu0 %v1029
    %v1068 = vpop.f32.mrf.mxu0
    %v1069 = vadd.f32 0.0, %v1068
    %1070 = vdwg.mxu0
    %v1071 = vadd.f32 %v799, %v1049
    %v1072 = vadd.f32 %v800, %v1069
    %v1073 = vxor.u32 %v1071, 2147483648
    %v1074 = vxor.u32 %v1072, 2147483648
    %v1075 = vmul.f32 %v1073, 1.442695
    %v1076 = vpow.pop %v1075
    %v1077 = vmul.f32 %v1074, 1.442695
    %v1078 = vpow.pop %v1077
    %v1079 = vadd.f32 %v1076, 1.0
    %v1080 = vadd.f32 %v1078, 1.0
    %v1081 = vrcp.pop %v1079
    %v1082 = vmul.f32 %v1079, %v1081
    %v1083 = vsub.f32 1.0, %v1082
    %v1084 = vmul.f32 %v1081, %v1083
    %v1085 = vadd.f32 %v1081, %v1084
    %vm1086 = vweird.f32 %v1079
    %vm1087 = vweird.f32 %v1081
    %vm1088 = vmor %vm1086, %vm1087
    %v1089 = vsel %vm1088, %v1081, %v1085
    %v1090 = vand.u32 2147483647, %v1079
    %vm1091 = vcmp.eq.f32.partialorder %v1090, 8.507059e+37
    %v1092 = vand.u32 %v1079, 2147483648
    %v1093 = vor.u32 1.1754944e-38, %v1092
    %v1094 = vsel %vm1091, %v1093, %v1089
    %v1095 = vmul.f32 1.0, %v1094
    %v1096 = vrcp.pop %v1080
    %v1097 = vmul.f32 %v1080, %v1096
    %v1098 = vsub.f32 1.0, %v1097
    %v1099 = vmul.f32 %v1096, %v1098
    %v1100 = vadd.f32 %v1096, %v1099
    %vm1101 = vweird.f32 %v1080
    %vm1102 = vweird.f32 %v1096
    %vm1103 = vmor %vm1101, %vm1102
    %v1104 = vsel %vm1103, %v1096, %v1100
    %v1105 = vand.u32 2147483647, %v1080
    %vm1106 = vcmp.eq.f32.partialorder %v1105, 8.507059e+37
    %v1107 = vand.u32 %v1080, 2147483648
    %v1108 = vor.u32 1.1754944e-38, %v1107
    %v1109 = vsel %vm1106, %v1108, %v1104
    %v1110 = vmul.f32 1.0, %v1109
    %v1111 = vtanh.pop %v1072
    %v1113 = vrot.slane %v1018, 2
    %v1115 = vmul.f32 %v1095, %v1113
    %1117 = vrot.lane.b32.xlu0 %v1111, 64
    %v1118 = vpop.permute.xlu0 %1117
    %v1120 = vmul.f32 %v1095, %v1118
    %1122 = vrot.lane.b32.xlu0 %v1120, 64
    %v1123 = vpop.permute.xlu0 %1122
    %v1125 = vadd.f32 %v1115, %v1123
    %v1126 = vtanh.pop %v1125
    %1128 = vrot.lane.b32.xlu0 %v1126, 64
    %v1129 = vpop.permute.xlu0 %1128
    %v1131 = vmul.f32 %v1110, %v1129
    %1132 = vst.msk [vmem:[%s291] sm:$0x3] %vm650, %v1131
    %1133 = vst.msk [vmem:[#allocation2] sm:$0x3] %vm653, %v1131
    %v1134 = vld [vmem:[#allocation2] sm:$0x3]
    %v1135 = vld [vmem:[#allocation2 + $0x2] sm:$0x3]
    %v1136 = vld [vmem:[#allocation2 + $0x4] sm:$0x3]
    %v1137 = vld [vmem:[#allocation2 + $0x6] sm:$0x3]
    %v1138 = vld [vmem:[#allocation2 + $0x8] sm:$0x3]
    %v1139 = vld [vmem:[#allocation2 + $0xa] sm:$0x3]
    %v1140 = vld [vmem:[#allocation2 + $0xc] sm:$0x3]
    %v1141 = vld [vmem:[#allocation2 + $0xe] sm:$0x3]
    %v1142 = vmul.f32 %v1134, %v1131
    %v1143 = vmul.f32 %v1135, %v1131
    %v1144 = vmul.f32 %v1136, %v1131
    %v1145 = vmul.f32 %v1137, %v1131
    %v1146 = vmul.f32 %v1138, %v1131
    %v1147 = vmul.f32 %v1139, %v1131
    %v1148 = vmul.f32 %v1140, %v1131
    %v1149 = vmul.f32 %v1141, %v1131
    %vm1150 = vcmask 517120
    %v1151 = vsel %vm1150, %v1142, 0.0
    %1152 = vadd.xlane.f32.xlu0 %v1151
    %v1153 = vpop.xlane.xlu0 %1152
    %v1154 = vsel %vm1150, %v1143, 0.0
    %1155 = vadd.xlane.f32.xlu0 %v1154
    %v1156 = vpop.xlane.xlu0 %1155
    %v1157 = vsel %vm1150, %v1144, 0.0
    %1158 = vadd.xlane.f32.xlu0 %v1157
    %v1159 = vpop.xlane.xlu0 %1158
    %v1160 = vsel %vm1150, %v1145, 0.0
    %1161 = vadd.xlane.f32.xlu0 %v1160
    %v1162 = vpop.xlane.xlu0 %1161
    %v1163 = vsel %vm1150, %v1146, 0.0
    %1164 = vadd.xlane.f32.xlu0 %v1163
    %v1165 = vpop.xlane.xlu0 %1164
    %v1166 = vsel %vm1150, %v1147, 0.0
    %1167 = vadd.xlane.f32.xlu0 %v1166
    %v1168 = vpop.xlane.xlu0 %1167
    %v1169 = vsel %vm1150, %v1148, 0.0
    %1170 = vadd.xlane.f32.xlu0 %v1169
    %v1171 = vpop.xlane.xlu0 %1170
    %v1172 = vsel %vm1150, %v1149, 0.0
    %1173 = vadd.xlane.f32.xlu0 %v1172
    %v1174 = vpop.xlane.xlu0 %1173
    %vm1175 = vcmask 1041408
    %v1176 = vsel %vm1175, %v1153, -inf
    %v1177 = vsel %vm1175, %v1156, -inf
    %v1178 = vsel %vm1175, %v1159, -inf
    %v1179 = vsel %vm1175, %v1162, -inf
    %v1180 = vsel %vm1175, %v1165, -inf
    %v1181 = vmax.f32 %v1176, %v1180
    %v1182 = vsel %vm1175, %v1168, -inf
    %v1183 = vmax.f32 %v1177, %v1182
    %v1184 = vsel %vm1175, %v1171, -inf
    %v1185 = vmax.f32 %v1178, %v1184
    %v1186 = vsel %vm1175, %v1174, -inf
    %v1187 = vmax.f32 %v1179, %v1186
    %v1188 = vmax.f32 %v1181, %v1183
    %v1189 = vmax.f32 %v1185, %v1187
    %v1190 = vmax.f32 %v1188, %v1189
    %v1191 = vsub.f32 %v1153, %v1190
    %v1192 = vsub.f32 %v1156, %v1190
    %v1193 = vsub.f32 %v1159, %v1190
    %v1194 = vsub.f32 %v1162, %v1190
    %v1195 = vsub.f32 %v1165, %v1190
    %v1196 = vsub.f32 %v1168, %v1190
    %v1197 = vsub.f32 %v1171, %v1190
    %v1198 = vsub.f32 %v1174, %v1190
    %v1199 = vmul.f32 %v1191, 1.442695
    %v1200 = vpow.pop %v1199
    %v1201 = vmul.f32 %v1192, 1.442695
    %v1202 = vpow.pop %v1201
    %v1203 = vmul.f32 %v1193, 1.442695
    %v1204 = vpow.pop %v1203
    %v1205 = vmul.f32 %v1194, 1.442695
    %v1206 = vpow.pop %v1205
    %v1207 = vmul.f32 %v1195, 1.442695
    %v1208 = vpow.pop %v1207
    %v1209 = vmul.f32 %v1196, 1.442695
    %v1210 = vpow.pop %v1209
    %v1211 = vmul.f32 %v1197, 1.442695
    %v1212 = vpow.pop %v1211
    %v1213 = vmul.f32 %v1198, 1.442695
    %v1214 = vpow.pop %v1213
    %v1215 = vsel %vm1175, %v1200, 0.0
    %v1216 = vsel %vm1175, %v1202, 0.0
    %v1217 = vadd.f32 %v1215, %v1216
    %v1218 = vsel %vm1175, %v1204, 0.0
    %v1219 = vadd.f32 %v1217, %v1218
    %v1220 = vsel %vm1175, %v1206, 0.0
    %v1221 = vadd.f32 %v1219, %v1220
    %v1222 = vsel %vm1175, %v1208, 0.0
    %v1223 = vadd.f32 %v1221, %v1222
    %v1224 = vsel %vm1175, %v1210, 0.0
    %v1225 = vadd.f32 %v1223, %v1224
    %v1226 = vsel %vm1175, %v1212, 0.0
    %v1227 = vadd.f32 %v1225, %v1226
    %v1228 = vsel %vm1175, %v1214, 0.0
    %v1229 = vadd.f32 %v1227, %v1228
    %v1230 = vrcp.pop %v1229
    %v1231 = vmul.f32 %v1229, %v1230
    %v1232 = vsub.f32 1.0, %v1231
    %v1233 = vmul.f32 %v1230, %v1232
    %v1234 = vadd.f32 %v1230, %v1233
    %vm1235 = vweird.f32 %v1229
    %vm1236 = vweird.f32 %v1230
    %vm1237 = vmor %vm1235, %vm1236
    %v1238 = vsel %vm1237, %v1230, %v1234
    %v1239 = vand.u32 2147483647, %v1229
    %vm1240 = vcmp.eq.f32.partialorder %v1239, 8.507059e+37
    %v1241 = vand.u32 %v1229, 2147483648
    %v1242 = vor.u32 1.1754944e-38, %v1241
    %v1243 = vsel %vm1240, %v1242, %v1238
    %v1244 = vmul.f32 %v1200, %v1243
    %v1245 = vmul.f32 %v1202, %v1243
    %v1246 = vmul.f32 %v1204, %v1243
    %v1247 = vmul.f32 %v1206, %v1243
    %v1248 = vmul.f32 %v1208, %v1243
    %v1249 = vmul.f32 %v1210, %v1243
    %v1250 = vmul.f32 %v1212, %v1243
    %v1251 = vmul.f32 %v1214, %v1243
    %v1252 = vmul.f32 %v1134, %v1244
    %v1253 = vmul.f32 %v1135, %v1245
    %v1254 = vmul.f32 %v1136, %v1246
    %v1255 = vmul.f32 %v1137, %v1247
    %v1256 = vmul.f32 %v1138, %v1248
    %v1257 = vmul.f32 %v1139, %v1249
    %v1258 = vmul.f32 %v1140, %v1250
    %v1259 = vmul.f32 %v1141, %v1251
    %v1260 = vsel %vm1150, %v1252, 0.0
    %v1261 = vsel %vm1150, %v1253, 0.0
    %v1262 = vadd.f32 %v1260, %v1261
    %v1263 = vsel %vm1150, %v1254, 0.0
    %v1264 = vadd.f32 %v1262, %v1263
    %v1265 = vsel %vm1150, %v1255, 0.0
    %v1266 = vadd.f32 %v1264, %v1265
    %v1267 = vsel %vm1150, %v1256, 0.0
    %v1268 = vadd.f32 %v1266, %v1267
    %v1269 = vsel %vm1150, %v1257, 0.0
    %v1270 = vadd.f32 %v1268, %v1269
    %v1271 = vsel %vm1150, %v1258, 0.0
    %v1272 = vadd.f32 %v1270, %v1271
    %v1273 = vsel %vm1150, %v1259, 0.0
    %v1274 = vadd.f32 %v1272, %v1273
    %v1275 = vld [vmem:[%s5] sm:$0xff]
    %v1276 = vld [vmem:[%s5 + $0x8] sm:$0xff]
    %v1277 = vld [vmem:[%s5 + $0x10] sm:$0xff]
    %v1278 = vld [vmem:[%s5 + $0x18] sm:$0xff]
    %v1279 = vld [vmem:[%s5 + $0x20] sm:$0xff]
    %v1280 = vld [vmem:[%s5 + $0x28] sm:$0xff]
    %v1281 = vld [vmem:[%s5 + $0x30] sm:$0xff]
    %v1282 = vld [vmem:[%s5 + $0x38] sm:$0xff]
    %v1283 = vld [vmem:[%s6] sm:$0x1]
    %v1285 = vperm.slane %v1283, 0
    %v1288 = vsel %vm181, %v1274, 0
    %1290 = vmatpush.msra.mxu0 0.0
    %1291 = vmatpush.msra.mxu0 0.0
    %1292 = vmatpush.msra.mxu0 0.0
    %1293 = vmatpush.msra.mxu0 0.0
    %1294 = vmatpush.msra.mxu0 0.0
    %1295 = vmatpush.msra.mxu0 0.0
    %1296 = vmatpush.msra.mxu0 0.0
    %1297 = vmatpush.msra.mxu0 0.0
    %1298 = vmatpush.msra.mxu0 %v1282
    %1299 = vmatpush.msra.mxu0 %v1281
    %1300 = vmatpush.msra.mxu0 %v1280
    %1301 = vmatpush.msra.mxu0 %v1279
    %1302 = vmatpush.msra.mxu0 %v1278
    %1303 = vmatpush.msra.mxu0 %v1277
    %1304 = vmatpush.msra.mxu0 %v1276
    %1305 = vmatpush.msra.mxu0 %v1275
    %1306 = vmatmul.f32.gmra.mxu0 %v1288
    %v1307 = vpop.f32.mrf.mxu0
    %v1308 = vadd.f32 %v1285, %v1307
    %1309 = vdwg.mxu0
    %vm1310 = vcmask 9216
    %1311 = vst.msk [vmem:[#allocation9] sm:$0x3] %vm1310, %v1308
    // Predicated region
    $region42: #{tpu_custom_call.1} parent=1 // pred_check
      _
    $region43: #{tpu_custom_call.1} parent=1 // pred_check_branch
      %1313 = sbr.rel (0) target = $region45
    $region44: #{tpu_custom_call.1} parent=1 // pred_region
      %1315 = vsyncadd [#allocation5], 0
      %s1317 = sshll.u32 [#allocation9], 4
      %s1318 = int_to_ptr.vmem [resolvable:$true] %s1317
      %s1319 = sshll.u32 %s7, 4
      %s1320 = int_to_ptr.hbm [resolvable:$true] %s1319
      %1322 = dma.vmem_to_hbm [thread:$0]  %s1318, 32, %s1320, [#allocation5]
    $region45: #{tpu_custom_call.1} parent=1 // pred_fallthru
      _
    // Predicated region
    $region46: #{tpu_custom_call.1} parent=1 // pred_check
      _
    $region47: #{tpu_custom_call.1} parent=1 // pred_check_branch
      %1324 = sbr.rel (0) target = $region49
    $region48: #{tpu_custom_call.1} parent=1 // pred_region
      %1326 = dma.done [#allocation5], 32
    $region49: #{tpu_custom_call.1} parent=1 // pred_fallthru
      _
    %1327 = vsyncpa [#allocation4], 1
    %1328 = vsyncpa [#allocation7], 1
    %1329 = vsyncpa [#allocation5], 1

</llo_original>
